<compile_context>
chip_gen: v6e
topology: v6e:2x2x1
jax: 0.10.0
libtpu: 0.0.40
codegen_flags: <defaults>
</compile_context>

<pallas_src>
import jax
import jax.numpy as jnp
from jax.experimental import pallas as pl
from jax.experimental.pallas import tpu as pltpu


def _self_attn_kernel(xq_ref, xf_ref, wq_ref, bq_ref, wkv_ref, bkv_ref,
                      wo_ref, bo_ref, gamma_ref, out_ref):
    """One (batch, query-tile) grid step, channels-on-sublanes layout.

    xq_ref : (1, C, tq)   query tile of x (also the residual input)
    xf_ref : (1, C, N)    full x for the K/V projections
    out_ref: (1, Cout, tq)
    """
    xq = xq_ref[0]                                                  # (C, tq)
    xf = xf_ref[0]                                                  # (C, N)
    C = xq.shape[0]

    # Projections: Wq @ x_tile, fused [Wk; Wv] @ x_full (1x1 convs).
    q = jnp.dot(wq_ref[...], xq, preferred_element_type=jnp.float32) + bq_ref[...]
    kv = jnp.dot(wkv_ref[...], xf, preferred_element_type=jnp.float32) + bkv_ref[...]
    k = kv[:C, :]                                                   # (C, N)
    v = kv[C:, :]                                                   # (C, N)

    # Scores S[i, j] = sum_c q[c, i] * k[c, j]  -> (tq, N)  (rows of Q^T K for this tile)
    s = jax.lax.dot_general(
        q.astype(jnp.bfloat16), k.astype(jnp.bfloat16),
        dimension_numbers=(((0,), (0,)), ((), ())),
        preferred_element_type=jnp.float32)

    # Exact row softmax (full key axis is present in this tile).
    s_max = jnp.max(s, axis=-1, keepdims=True)
    e = jnp.exp(s - s_max)
    denom = jnp.sum(e, axis=-1, keepdims=True)
    attn = e * pl.reciprocal(denom, approx=True)                    # (tq, N)

    # sa[c, i] = sum_j v[c, j] * attn[i, j]  -> (C, tq)  (columns of V @ attn^T for this tile)
    sa = jax.lax.dot_general(
        v.astype(jnp.bfloat16), attn.astype(jnp.bfloat16),
        dimension_numbers=(((1,), (1,)), ((), ())),
        preferred_element_type=jnp.float32)

    y = gamma_ref[0] * sa + xq                                      # gamma * SA + x (residual)

    out = jnp.dot(wo_ref[...], y, preferred_element_type=jnp.float32) + bo_ref[...]
    out_ref[0] = out.astype(out_ref.dtype)                          # (Cout, tq), lane-dense


def _choose_tq(N, max_tq):
    """Largest power-of-two query tile <= max_tq that divides N (else full N)."""
    for cand in (1024, 512, 256, 128):
        if cand <= max_tq and N % cand == 0:
            return cand
    return N


def self_attention_pallas(x, params, *, max_tq=512):
    """x: (B, C, H, W) float32, NCHW like PyTorch."""
    B, C, H, W = x.shape
    N = H * W
    Cout = params["wo"].shape[0]

    # NCHW -> (B, C, N): a pure reshape, no transpose needed in this layout.
    x_r = x.reshape(B, C, N)

    tq = _choose_tq(N, max_tq)
    num_q = N // tq

    wq = params["wq"]                                               # (C, C)
    bq = params["bq"].reshape(C, 1)
    wkv = jnp.concatenate([params["wk"], params["wv"]], axis=0)     # (2C, C)
    bkv = jnp.concatenate([params["bk"], params["bv"]], axis=0).reshape(2 * C, 1)
    wo = params["wo"]                                               # (Cout, C)
    bo = params["bo"].reshape(Cout, 1)
    gamma = params["gamma"].reshape(1).astype(jnp.float32)          # SMEM scalar

    def full_spec(shape):
        return pl.BlockSpec(shape, lambda b, qi: tuple(0 for _ in shape))

    out_r = pl.pallas_call(
        _self_attn_kernel,
        out_shape=jax.ShapeDtypeStruct((B, Cout, N), jnp.float32),
        grid=(B, num_q),
        in_specs=[
            pl.BlockSpec((1, C, tq), lambda b, qi: (b, 0, qi)),     # x query tile
            pl.BlockSpec((1, C, N), lambda b, qi: (b, 0, 0)),       # full x for K/V
            full_spec((C, C)), full_spec((C, 1)),                   # Wq, bq
            full_spec((2 * C, C)), full_spec((2 * C, 1)),           # [Wk;Wv], [bk;bv]
            full_spec((Cout, C)), full_spec((Cout, 1)),             # Wo, bo
            pl.BlockSpec(memory_space=pltpu.MemorySpace.SMEM),      # gamma scalar
        ],
        out_specs=pl.BlockSpec((1, Cout, tq), lambda b, qi: (b, 0, qi)),
        compiler_params=pltpu.CompilerParams(
            dimension_semantics=("parallel", "parallel"),
            vmem_limit_bytes=32 * 1024 * 1024),                     # safe on v5e/v6e/v7x
    )(x_r, x_r, wq, bq, wkv, bkv, wo, bo, gamma)

    return out_r.reshape(B, Cout, H, W)


def self_attention_ref(x, params):
    """Pure-JAX reference mirroring the PyTorch forward exactly (NCHW)."""
    B, C, H, W = x.shape
    xf = x.reshape(B, C, H * W)
    proj = lambda w, b: jnp.einsum("oc,bcn->bon", w, xf) + b[None, :, None]
    Q = proj(params["wq"], params["bq"])
    K = proj(params["wk"], params["bk"])
    V = proj(params["wv"], params["bv"])
    s = jnp.einsum("bcn,bcm->bnm", Q, K)                            # Q^T K
    attn = jax.nn.softmax(s, axis=-1)
    sa = jnp.einsum("bcn,bmn->bcm", V, attn)                        # V @ attn^T
    sa = params["gamma"][0] * sa + xf
    out = jnp.einsum("oc,bcn->bon", params["wo"], sa) + params["bo"][None, :, None]
    return out.reshape(B, -1, H, W)


def init_params(key, input_dim, output_dim):
    ks = jax.random.split(key, 8)
    return {
        "wq": jax.random.normal(ks[0], (input_dim, input_dim), jnp.float32) * 0.1,
        "bq": jax.random.normal(ks[1], (input_dim,), jnp.float32) * 0.1,
        "wk": jax.random.normal(ks[2], (input_dim, input_dim), jnp.float32) * 0.1,
        "bk": jax.random.normal(ks[3], (input_dim,), jnp.float32) * 0.1,
        "wv": jax.random.normal(ks[4], (input_dim, input_dim), jnp.float32) * 0.1,
        "bv": jax.random.normal(ks[5], (input_dim,), jnp.float32) * 0.1,
        "wo": jax.random.normal(ks[6], (output_dim, input_dim), jnp.float32) * 0.1,
        "bo": jax.random.normal(ks[7], (output_dim,), jnp.float32) * 0.1,
        "gamma": jnp.ones((1,), jnp.float32),                       # torch.ones(1)
    }


if __name__ == "__main__":
    key = jax.random.PRNGKey(0)
    kx, kp = jax.random.split(key)

    B, C, H, W = 2, 4, 16, 16      # input_dim = 4
    OUT_DIM = 8                    # output_dim = 8, kernel_size = 1, bias = True

    x = jax.random.normal(kx, (B, C, H, W), jnp.float32)
    params = init_params(kp, C, OUT_DIM)

    ref = self_attention_ref(x, params)

    # Single query tile (tq = N = 256) and tiled (tq = 128 -> grid (B, 2)) paths.
    out = jax.block_until_ready(self_attention_pallas(x, params))
    out_tiled = jax.block_until_ready(self_attention_pallas(x, params, max_tq=128))

    assert out.shape == (B, OUT_DIM, H, W), out.shape
    assert out_tiled.shape == (B, OUT_DIM, H, W), out_tiled.shape
    # bf16 score/attn matmuls + approx reciprocal -> slightly looser tolerance.
    for o in (out, out_tiled):
        err = float(jnp.max(jnp.abs(o - ref)))
        assert err < 3e-2, err

    print("KERNEL_OK")
</pallas_src>

<mosaic_0001>
module attributes {stable_mosaic.version = 11 : i64} {
  func.func @_self_attn_kernel(%arg0: i32, %arg1: i32, %arg2: memref<1x4x256xf32, #tpu.memory_space<vmem>>, %arg3: memref<1x4x256xf32, #tpu.memory_space<vmem>>, %arg4: memref<4x4xf32, #tpu.memory_space<vmem>>, %arg5: memref<4x1xf32, #tpu.memory_space<vmem>>, %arg6: memref<8x4xf32, #tpu.memory_space<vmem>>, %arg7: memref<8x1xf32, #tpu.memory_space<vmem>>, %arg8: memref<8x4xf32, #tpu.memory_space<vmem>>, %arg9: memref<8x1xf32, #tpu.memory_space<vmem>>, %arg10: memref<1xf32, #tpu.memory_space<smem>>, %arg11: memref<1x8x256xf32, #tpu.memory_space<vmem>>) attributes {dimension_semantics = [#tpu.dimension_semantics<parallel>, #tpu.dimension_semantics<parallel>], iteration_bounds = array<i64: 2, 1>, scalar_prefetch = 0 : i64, scratch_operands = 0 : i64, tpu.core_type = #tpu.core_type<tc>, window_params = [{transform_indices = @transform_0, window_bounds = array<i64: 1, 4, 256>}, {transform_indices = @transform_1, window_bounds = array<i64: 1, 4, 256>}, {pipeline_mode = #tpu.pipeline_mode<synchronous>, transform_indices = @transform_2, window_bounds = array<i64: 4, 4>}, {pipeline_mode = #tpu.pipeline_mode<synchronous>, transform_indices = @transform_3, window_bounds = array<i64: 4, 1>}, {pipeline_mode = #tpu.pipeline_mode<synchronous>, transform_indices = @transform_4, window_bounds = array<i64: 8, 4>}, {pipeline_mode = #tpu.pipeline_mode<synchronous>, transform_indices = @transform_5, window_bounds = array<i64: 8, 1>}, {pipeline_mode = #tpu.pipeline_mode<synchronous>, transform_indices = @transform_6, window_bounds = array<i64: 8, 4>}, {pipeline_mode = #tpu.pipeline_mode<synchronous>, transform_indices = @transform_7, window_bounds = array<i64: 8, 1>}, {transform_indices = @transform_8, window_bounds = array<i64: 1>}, {transform_indices = @transform_9, window_bounds = array<i64: 1, 8, 256>}]} {
    %c0 = arith.constant 0 : index
    %c0_0 = arith.constant 0 : index
    %c0_1 = arith.constant 0 : index
    %0 = vector.load %arg2[%c0, %c0_0, %c0_1] : memref<1x4x256xf32, #tpu.memory_space<vmem>>, vector<1x4x256xf32>
    %1 = vector.shape_cast %0 : vector<1x4x256xf32> to vector<4x256xf32>
    %c0_2 = arith.constant 0 : index
    %c0_3 = arith.constant 0 : index
    %c0_4 = arith.constant 0 : index
    %2 = vector.load %arg3[%c0_2, %c0_3, %c0_4] : memref<1x4x256xf32, #tpu.memory_space<vmem>>, vector<1x4x256xf32>
    %3 = vector.shape_cast %2 : vector<1x4x256xf32> to vector<4x256xf32>
    %c0_5 = arith.constant 0 : index
    %c0_6 = arith.constant 0 : index
    %4 = vector.load %arg4[%c0_5, %c0_6] : memref<4x4xf32, #tpu.memory_space<vmem>>, vector<4x4xf32>
    %cst = arith.constant dense<0.000000e+00> : vector<4x256xf32>
    %5 = tpu.matmul %4, %1, %cst {dimension_numbers = #tpu.dot_dimension_numbers<[1], [0], [0], [1], [0, 0, 1, 1], [], []>} : vector<4x4xf32>, vector<4x256xf32>, vector<4x256xf32> -> vector<4x256xf32>
    %c0_7 = arith.constant 0 : index
    %c0_8 = arith.constant 0 : index
    %6 = vector.load %arg5[%c0_7, %c0_8] : memref<4x1xf32, #tpu.memory_space<vmem>>, vector<4x1xf32>
    %7 = vector.broadcast %6 : vector<4x1xf32> to vector<4x256xf32>
    %8 = arith.addf %5, %7 : vector<4x256xf32>
    %c0_9 = arith.constant 0 : index
    %c0_10 = arith.constant 0 : index
    %9 = vector.load %arg6[%c0_9, %c0_10] : memref<8x4xf32, #tpu.memory_space<vmem>>, vector<8x4xf32>
    %cst_11 = arith.constant dense<0.000000e+00> : vector<8x256xf32>
    %10 = tpu.matmul %9, %3, %cst_11 {dimension_numbers = #tpu.dot_dimension_numbers<[1], [0], [0], [1], [0, 0, 1, 1], [], []>} : vector<8x4xf32>, vector<4x256xf32>, vector<8x256xf32> -> vector<8x256xf32>
    %c0_12 = arith.constant 0 : index
    %c0_13 = arith.constant 0 : index
    %11 = vector.load %arg7[%c0_12, %c0_13] : memref<8x1xf32, #tpu.memory_space<vmem>>, vector<8x1xf32>
    %12 = vector.broadcast %11 : vector<8x1xf32> to vector<8x256xf32>
    %13 = arith.addf %10, %12 : vector<8x256xf32>
    %14 = vector.extract_strided_slice %13 {offsets = [0, 0], sizes = [4, 256], strides = [1, 1]} : vector<8x256xf32> to vector<4x256xf32>
    %15 = vector.extract_strided_slice %13 {offsets = [4, 0], sizes = [4, 256], strides = [1, 1]} : vector<8x256xf32> to vector<4x256xf32>
    %16 = arith.truncf %8 : vector<4x256xf32> to vector<4x256xbf16>
    %17 = arith.truncf %14 : vector<4x256xf32> to vector<4x256xbf16>
    %cst_14 = arith.constant dense<0.000000e+00> : vector<256x256xf32>
    %18 = tpu.matmul %16, %17, %cst_14 {dimension_numbers = #tpu.dot_dimension_numbers<[0], [0], [1], [1], [0, 1, 1, 1], [], []>} : vector<4x256xbf16>, vector<4x256xbf16>, vector<256x256xf32> -> vector<256x256xf32>
    %cst_15 = arith.constant dense<0xFF800000> : vector<256xf32>
    %19 = vector.multi_reduction <maximumf>, %18, %cst_15 [1] : vector<256x256xf32> to vector<256xf32>
    %20 = vector.shape_cast %19 : vector<256xf32> to vector<256x1xf32>
    %21 = vector.broadcast %20 : vector<256x1xf32> to vector<256x256xf32>
    %22 = arith.subf %18, %21 : vector<256x256xf32>
    %23 = math.exp %22 : vector<256x256xf32>
    %cst_16 = arith.constant dense<0.000000e+00> : vector<256xf32>
    %24 = vector.multi_reduction <add>, %23, %cst_16 [1] : vector<256x256xf32> to vector<256xf32>
    %25 = vector.shape_cast %24 : vector<256xf32> to vector<256x1xf32>
    %26 = tpu.reciprocal %25 {approx = true} : vector<256x1xf32> -> vector<256x1xf32>
    %27 = vector.broadcast %26 : vector<256x1xf32> to vector<256x256xf32>
    %28 = arith.mulf %23, %27 : vector<256x256xf32>
    %29 = arith.truncf %15 : vector<4x256xf32> to vector<4x256xbf16>
    %30 = arith.truncf %28 : vector<256x256xf32> to vector<256x256xbf16>
    %cst_17 = arith.constant dense<0.000000e+00> : vector<4x256xf32>
    %31 = tpu.matmul %29, %30, %cst_17 {dimension_numbers = #tpu.dot_dimension_numbers<[1], [1], [0], [0], [0, 0, 1, 0], [], []>} : vector<4x256xbf16>, vector<256x256xbf16>, vector<4x256xf32> -> vector<4x256xf32>
    %c0_18 = arith.constant 0 : index
    %32 = memref.load %arg10[%c0_18] : memref<1xf32, #tpu.memory_space<smem>>
    %33 = vector.broadcast %32 : f32 to vector<4x256xf32>
    %34 = arith.mulf %33, %31 : vector<4x256xf32>
    %35 = arith.addf %34, %1 : vector<4x256xf32>
    %c0_19 = arith.constant 0 : index
    %c0_20 = arith.constant 0 : index
    %36 = vector.load %arg8[%c0_19, %c0_20] : memref<8x4xf32, #tpu.memory_space<vmem>>, vector<8x4xf32>
    %cst_21 = arith.constant dense<0.000000e+00> : vector<8x256xf32>
    %37 = tpu.matmul %36, %35, %cst_21 {dimension_numbers = #tpu.dot_dimension_numbers<[1], [0], [0], [1], [0, 0, 1, 1], [], []>} : vector<8x4xf32>, vector<4x256xf32>, vector<8x256xf32> -> vector<8x256xf32>
    %c0_22 = arith.constant 0 : index
    %c0_23 = arith.constant 0 : index
    %38 = vector.load %arg9[%c0_22, %c0_23] : memref<8x1xf32, #tpu.memory_space<vmem>>, vector<8x1xf32>
    %39 = vector.broadcast %38 : vector<8x1xf32> to vector<8x256xf32>
    %40 = arith.addf %37, %39 : vector<8x256xf32>
    %c0_24 = arith.constant 0 : index
    %c0_25 = arith.constant 0 : index
    %c0_26 = arith.constant 0 : index
    %41 = vector.load %arg11[%c0_24, %c0_25, %c0_26] : memref<1x8x256xf32, #tpu.memory_space<vmem>>, vector<1x8x256xf32>
    %42 = vector.shape_cast %41 : vector<1x8x256xf32> to vector<8x256xf32>
    %43 = vector.shape_cast %40 : vector<8x256xf32> to vector<1x8x256xf32>
    tpu.vector_store %arg11[%c0_24, %c0_25, %c0_26], %43 {strides = array<i32>} : memref<1x8x256xf32, #tpu.memory_space<vmem>>, vector<1x8x256xf32>,
    return
  }
  func.func @transform_0(%arg0: i32, %arg1: i32) -> (i32, i32, i32) {
    %c0_i32 = arith.constant 0 : i32
    %c0_i32_0 = arith.constant 0 : i32
    return %arg0, %c0_i32, %arg1 : i32, i32, i32
  }
  func.func @transform_1(%arg0: i32, %arg1: i32) -> (i32, i32, i32) {
    %c0_i32 = arith.constant 0 : i32
    %c0_i32_0 = arith.constant 0 : i32
    %c0_i32_1 = arith.constant 0 : i32
    return %arg0, %c0_i32, %c0_i32_0 : i32, i32, i32
  }
  func.func @transform_2(%arg0: i32, %arg1: i32) -> (i32, i32) {
    %c0_i32 = arith.constant 0 : i32
    %c0_i32_0 = arith.constant 0 : i32
    %c0_i32_1 = arith.constant 0 : i32
    return %c0_i32, %c0_i32_0 : i32, i32
  }
  func.func @transform_3(%arg0: i32, %arg1: i32) -> (i32, i32) {
    %c0_i32 = arith.constant 0 : i32
    %c0_i32_0 = arith.constant 0 : i32
    %c0_i32_1 = arith.constant 0 : i32
    return %c0_i32, %c0_i32_0 : i32, i32
  }
  func.func @transform_4(%arg0: i32, %arg1: i32) -> (i32, i32) {
    %c0_i32 = arith.constant 0 : i32
    %c0_i32_0 = arith.constant 0 : i32
    %c0_i32_1 = arith.constant 0 : i32
    return %c0_i32, %c0_i32_0 : i32, i32
  }
  func.func @transform_5(%arg0: i32, %arg1: i32) -> (i32, i32) {
    %c0_i32 = arith.constant 0 : i32
    %c0_i32_0 = arith.constant 0 : i32
    %c0_i32_1 = arith.constant 0 : i32
    return %c0_i32, %c0_i32_0 : i32, i32
  }
  func.func @transform_6(%arg0: i32, %arg1: i32) -> (i32, i32) {
    %c0_i32 = arith.constant 0 : i32
    %c0_i32_0 = arith.constant 0 : i32
    %c0_i32_1 = arith.constant 0 : i32
    return %c0_i32, %c0_i32_0 : i32, i32
  }
  func.func @transform_7(%arg0: i32, %arg1: i32) -> (i32, i32) {
    %c0_i32 = arith.constant 0 : i32
    %c0_i32_0 = arith.constant 0 : i32
    %c0_i32_1 = arith.constant 0 : i32
    return %c0_i32, %c0_i32_0 : i32, i32
  }
  func.func @transform_8(%arg0: i32, %arg1: i32) -> i32 {
    %c0_i32 = arith.constant 0 : i32
    %c0_i32_0 = arith.constant 0 : i32
    return %c0_i32 : i32
  }
  func.func @transform_9(%arg0: i32, %arg1: i32) -> (i32, i32, i32) {
    %c0_i32 = arith.constant 0 : i32
    %c0_i32_0 = arith.constant 0 : i32
    return %arg0, %c0_i32, %arg1 : i32, i32, i32
  }
}

</mosaic_0001>

<llo_original>
// kernel: tpu_custom_call.1
$region0: #{tpu_custom_call.1}
  #allocation0 [shape = 'u32[]', space=smem, size = 0x4, offset = 0x4, fixed_abs, tag = 'smem constant byte address 0x4 - core index']
  #allocation1 [shape = 'u32[144,128]{1,0:T(1,128)}', space=vmem, size = 0x12000, scoped, tag = 'internal scratch']
  #allocation2 [shape = 'f32[1]{0:T(128)S(6)}', space=smem, size = 0x200, scoped, tag = 'scoped memory for tpu_custom_call.1']
  %s0 = inlined_call_operand.vmem [shape: f32[2,4,256], index: 0, kind: input, shape index: {}]
  %s1 = inlined_call_operand.vmem [shape: f32[2,4,256], index: 1, kind: input, shape index: {}]
  %s2 = inlined_call_operand.vmem [shape: f32[4,4], index: 2, kind: input, shape index: {}]
  %s3 = inlined_call_operand.vmem [shape: f32[4,1], index: 3, kind: input, shape index: {}]
  %s4 = inlined_call_operand.vmem [shape: f32[8,4], index: 4, kind: input, shape index: {}]
  %s5 = inlined_call_operand.vmem [shape: f32[8,1], index: 5, kind: input, shape index: {}]
  %s6 = inlined_call_operand.vmem [shape: f32[8,4], index: 6, kind: input, shape index: {}]
  %s7 = inlined_call_operand.vmem [shape: f32[8,1], index: 7, kind: input, shape index: {}]
  %s8 = inlined_call_operand.<no memory space> [shape: f32[1], index: 8, kind: input, shape index: {}]
  %s9 = inlined_call_operand.hbm [shape: f32[2,8,256], index: 9, kind: output, shape index: {}]
  %s10 = sld [smem:[#allocation0]]
  $region69: #{tpu_custom_call.1} parent=0
    _
  %s12 = ssub.s32 1, %s10
  %s13 = scalar_select 0, %s12, %s10
  %14 = sst [smem:[#allocation2]] %s8
  $region1: #{tpu_custom_call.1} parent=0
    #allocation3 [shape = 'u8[16384]{0}', space=vmem, size = 0x4000, scoped, tag = 'output window, operand 0']
    #allocation4 [shape = 's32[2]{0}', space=sflag, size = 0x8, scoped, tag = 'scoped memory for tpu_custom_call.1']
    %15 = vsyncpa [#allocation4], 0
    %s16 = scalar_lea.sflag [#allocation4], 1
    %17 = vsyncpa %s16, 0
    loop: start=0, step=1, limit=4
    $region2: #{tpu_custom_call.1} parent=1 // loop_pre_header
      _
    $region3: #{tpu_custom_call.1} parent=1 // loop_header
      %s19 = sphi 0, %s23
      %p20 = scmp.ge.s32.totalorder %s19, 4
      %s26 = sphi 0, %s38
      %s27 = sphi 0, %s34
      %s28 = sphi 0, %s26
      %s29 = sphi 0, %s27
      %s30 = sphi 0, %s28
      %s31 = sphi 0, %s29
      %s43 = sphi 0, %s45
      %s46 = sphi 0, %s43
      %s47 = sphi 0, %s46
      %s63 = sphi 0, %s47
      %s69 = sphi 0, %s71
      %s72 = sphi 0, %s69
      %s73 = sphi 0, %s72
      %s89 = sphi 0, %s73
      %s93 = sphi 0, %s93
      %s95 = sphi 0, %s93
      %s96 = sphi 0, %s95
      %s110 = sphi 0, %s96
      %s114 = sphi 0, %s114
      %s116 = sphi 0, %s114
      %s117 = sphi 0, %s116
      %s131 = sphi 0, %s117
      %s135 = sphi 0, %s135
      %s137 = sphi 0, %s135
      %s138 = sphi 0, %s137
      %s152 = sphi 0, %s138
      %s156 = sphi 0, %s156
      %s158 = sphi 0, %s156
      %s159 = sphi 0, %s158
      %s173 = sphi 0, %s159
      %s177 = sphi 0, %s177
      %s179 = sphi 0, %s177
      %s180 = sphi 0, %s179
      %s194 = sphi 0, %s180
      %s198 = sphi 0, %s198
      %s200 = sphi 0, %s198
      %s201 = sphi 0, %s200
      %s215 = sphi 0, %s201
      %s219 = sphi 0, %s219
      %s221 = sphi 0, %s219
      %s222 = sphi 0, %s221
      %s236 = sphi 0, %s222
      %s244 = sphi 0, %s246
      %s247 = sphi 0, %s244
      %s248 = sphi 0, %s247
      %s264 = sphi 0, %s248
    $region4: #{tpu_custom_call.1} parent=1 // loop_header_branch
      %22 = sbr.rel (%p20) target = $region8
    $region5: #{tpu_custom_call.1} parent=1 // loop_body
      %s24 = ssub.s32 %s19, 1
      %s25 = ssub.s32 %s19, 2
      %s32 = sadd.s32 1, %s27
      %p33 = scmp.ge.s32.totalorder %s32, 1
      %s34 = scalar_select %p33, 0, %s32
      %s35 = sadd.s32 1, %s26
      %s36 = scalar_select %p33, %s35, %s26
      %p37 = scmp.ge.s32.totalorder %s36, 2
      %s38 = scalar_select %p37, 0, %s36
      %s39 = ssub.s32 %s26, %s38
      %s40 = ssub.s32 %s27, %s34
      %s41 = sor.u32 %s39, %s40
      %p42 = scmp.eq.s32.totalorder %s41, 0
      %s44 = sadd.s32 %s43, 1
      %s45 = scalar_select %p42, %s43, %s44
      %p48 = pneg %p42
      %p49 = scmp.eq.s32.totalorder %s19, 1
      %p50 = por %p48, %p49
      %p51 = scmp.ne.s32.totalorder %s43, %s46
      %p52 = scmp.eq.s32.totalorder %s19, 0
      %p53 = por %p51, %p52
      %p54 = scmp.ne.s32.totalorder %s43, %s46
      %p55 = scmp.eq.s32.totalorder %s24, 1
      %p56 = por %p54, %p55
      %p57 = scmp.ne.s32.totalorder %s46, %s47
      %p58 = scmp.eq.s32.totalorder %s24, 0
      %p59 = por %p57, %p58
      %p60 = scmp.ne.s32.totalorder %s46, %s47
      %p61 = scmp.eq.s32.totalorder %s25, 1
      %p62 = por %p60, %p61
      %p64 = scmp.ne.s32.totalorder %s47, %s63
      %p65 = scmp.eq.s32.totalorder %s25, 0
      %p66 = por %p64, %p65
      %s67 = ssub.s32 %s26, %s38
      %p68 = scmp.eq.s32.totalorder %s67, 0
      %s70 = sadd.s32 %s69, 1
      %s71 = scalar_select %p68, %s69, %s70
      %p74 = pneg %p68
      %p75 = scmp.eq.s32.totalorder %s19, 1
      %p76 = por %p74, %p75
      %p77 = scmp.ne.s32.totalorder %s69, %s72
      %p78 = scmp.eq.s32.totalorder %s19, 0
      %p79 = por %p77, %p78
      %p80 = scmp.ne.s32.totalorder %s69, %s72
      %p81 = scmp.eq.s32.totalorder %s24, 1
      %p82 = por %p80, %p81
      %p83 = scmp.ne.s32.totalorder %s72, %s73
      %p84 = scmp.eq.s32.totalorder %s24, 0
      %p85 = por %p83, %p84
      %p86 = scmp.ne.s32.totalorder %s72, %s73
      %p87 = scmp.eq.s32.totalorder %s25, 1
      %p88 = por %p86, %p87
      %p90 = scmp.ne.s32.totalorder %s73, %s89
      %p91 = scmp.eq.s32.totalorder %s25, 0
      %p92 = por %p90, %p91
      %s94 = sadd.s32 %s93, 1
      %p97 = scmp.eq.s32.totalorder %s19, 1
      %p98 = scmp.ne.s32.totalorder %s93, %s95
      %p99 = scmp.eq.s32.totalorder %s19, 0
      %p100 = por %p98, %p99
      %p101 = scmp.ne.s32.totalorder %s93, %s95
      %p102 = scmp.eq.s32.totalorder %s24, 1
      %p103 = por %p101, %p102
      %p104 = scmp.ne.s32.totalorder %s95, %s96
      %p105 = scmp.eq.s32.totalorder %s24, 0
      %p106 = por %p104, %p105
      %p107 = scmp.ne.s32.totalorder %s95, %s96
      %p108 = scmp.eq.s32.totalorder %s25, 1
      %p109 = por %p107, %p108
      %p111 = scmp.ne.s32.totalorder %s96, %s110
      %p112 = scmp.eq.s32.totalorder %s25, 0
      %p113 = por %p111, %p112
      %s115 = sadd.s32 %s114, 1
      %p118 = scmp.eq.s32.totalorder %s19, 1
      %p119 = scmp.ne.s32.totalorder %s114, %s116
      %p120 = scmp.eq.s32.totalorder %s19, 0
      %p121 = por %p119, %p120
      %p122 = scmp.ne.s32.totalorder %s114, %s116
      %p123 = scmp.eq.s32.totalorder %s24, 1
      %p124 = por %p122, %p123
      %p125 = scmp.ne.s32.totalorder %s116, %s117
      %p126 = scmp.eq.s32.totalorder %s24, 0
      %p127 = por %p125, %p126
      %p128 = scmp.ne.s32.totalorder %s116, %s117
      %p129 = scmp.eq.s32.totalorder %s25, 1
      %p130 = por %p128, %p129
      %p132 = scmp.ne.s32.totalorder %s117, %s131
      %p133 = scmp.eq.s32.totalorder %s25, 0
      %p134 = por %p132, %p133
      %s136 = sadd.s32 %s135, 1
      %p139 = scmp.eq.s32.totalorder %s19, 1
      %p140 = scmp.ne.s32.totalorder %s135, %s137
      %p141 = scmp.eq.s32.totalorder %s19, 0
      %p142 = por %p140, %p141
      %p143 = scmp.ne.s32.totalorder %s135, %s137
      %p144 = scmp.eq.s32.totalorder %s24, 1
      %p145 = por %p143, %p144
      %p146 = scmp.ne.s32.totalorder %s137, %s138
      %p147 = scmp.eq.s32.totalorder %s24, 0
      %p148 = por %p146, %p147
      %p149 = scmp.ne.s32.totalorder %s137, %s138
      %p150 = scmp.eq.s32.totalorder %s25, 1
      %p151 = por %p149, %p150
      %p153 = scmp.ne.s32.totalorder %s138, %s152
      %p154 = scmp.eq.s32.totalorder %s25, 0
      %p155 = por %p153, %p154
      %s157 = sadd.s32 %s156, 1
      %p160 = scmp.eq.s32.totalorder %s19, 1
      %p161 = scmp.ne.s32.totalorder %s156, %s158
      %p162 = scmp.eq.s32.totalorder %s19, 0
      %p163 = por %p161, %p162
      %p164 = scmp.ne.s32.totalorder %s156, %s158
      %p165 = scmp.eq.s32.totalorder %s24, 1
      %p166 = por %p164, %p165
      %p167 = scmp.ne.s32.totalorder %s158, %s159
      %p168 = scmp.eq.s32.totalorder %s24, 0
      %p169 = por %p167, %p168
      %p170 = scmp.ne.s32.totalorder %s158, %s159
      %p171 = scmp.eq.s32.totalorder %s25, 1
      %p172 = por %p170, %p171
      %p174 = scmp.ne.s32.totalorder %s159, %s173
      %p175 = scmp.eq.s32.totalorder %s25, 0
      %p176 = por %p174, %p175
      %s178 = sadd.s32 %s177, 1
      %p181 = scmp.eq.s32.totalorder %s19, 1
      %p182 = scmp.ne.s32.totalorder %s177, %s179
      %p183 = scmp.eq.s32.totalorder %s19, 0
      %p184 = por %p182, %p183
      %p185 = scmp.ne.s32.totalorder %s177, %s179
      %p186 = scmp.eq.s32.totalorder %s24, 1
      %p187 = por %p185, %p186
      %p188 = scmp.ne.s32.totalorder %s179, %s180
      %p189 = scmp.eq.s32.totalorder %s24, 0
      %p190 = por %p188, %p189
      %p191 = scmp.ne.s32.totalorder %s179, %s180
      %p192 = scmp.eq.s32.totalorder %s25, 1
      %p193 = por %p191, %p192
      %p195 = scmp.ne.s32.totalorder %s180, %s194
      %p196 = scmp.eq.s32.totalorder %s25, 0
      %p197 = por %p195, %p196
      %s199 = sadd.s32 %s198, 1
      %p202 = scmp.eq.s32.totalorder %s19, 1
      %p203 = scmp.ne.s32.totalorder %s198, %s200
      %p204 = scmp.eq.s32.totalorder %s19, 0
      %p205 = por %p203, %p204
      %p206 = scmp.ne.s32.totalorder %s198, %s200
      %p207 = scmp.eq.s32.totalorder %s24, 1
      %p208 = por %p206, %p207
      %p209 = scmp.ne.s32.totalorder %s200, %s201
      %p210 = scmp.eq.s32.totalorder %s24, 0
      %p211 = por %p209, %p210
      %p212 = scmp.ne.s32.totalorder %s200, %s201
      %p213 = scmp.eq.s32.totalorder %s25, 1
      %p214 = por %p212, %p213
      %p216 = scmp.ne.s32.totalorder %s201, %s215
      %p217 = scmp.eq.s32.totalorder %s25, 0
      %p218 = por %p216, %p217
      %s220 = sadd.s32 %s219, 1
      %p223 = scmp.eq.s32.totalorder %s19, 1
      %p224 = scmp.ne.s32.totalorder %s219, %s221
      %p225 = scmp.eq.s32.totalorder %s19, 0
      %p226 = por %p224, %p225
      %p227 = scmp.ne.s32.totalorder %s219, %s221
      %p228 = scmp.eq.s32.totalorder %s24, 1
      %p229 = por %p227, %p228
      %p230 = scmp.ne.s32.totalorder %s221, %s222
      %p231 = scmp.eq.s32.totalorder %s24, 0
      %p232 = por %p230, %p231
      %p233 = scmp.ne.s32.totalorder %s221, %s222
      %p234 = scmp.eq.s32.totalorder %s25, 1
      %p235 = por %p233, %p234
      %p237 = scmp.ne.s32.totalorder %s222, %s236
      %p238 = scmp.eq.s32.totalorder %s25, 0
      %p239 = por %p237, %p238
      %s240 = ssub.s32 %s26, %s38
      %s241 = ssub.s32 %s27, %s34
      %s242 = sor.u32 %s240, %s241
      %p243 = scmp.eq.s32.totalorder %s242, 0
      %s245 = sadd.s32 %s244, 1
      %s246 = scalar_select %p243, %s244, %s245
      %p249 = pneg %p243
      %p250 = scmp.eq.s32.totalorder %s19, 1
      %p251 = por %p249, %p250
      %p252 = scmp.ne.s32.totalorder %s244, %s247
      %p253 = scmp.eq.s32.totalorder %s19, 0
      %p254 = por %p252, %p253
      %p255 = scmp.ne.s32.totalorder %s244, %s247
      %p256 = scmp.eq.s32.totalorder %s24, 1
      %p257 = por %p255, %p256
      %p258 = scmp.ne.s32.totalorder %s247, %s248
      %p259 = scmp.eq.s32.totalorder %s24, 0
      %p260 = por %p258, %p259
      %p261 = scmp.ne.s32.totalorder %s247, %s248
      %p262 = scmp.eq.s32.totalorder %s25, 1
      %p263 = por %p261, %p262
      %p265 = scmp.ne.s32.totalorder %s248, %s264
      %p266 = scmp.eq.s32.totalorder %s25, 0
      %p267 = por %p265, %p266
      %p268 = scmp.le.s32.totalorder 1, %s19
      %p269 = scmp.lt.s32.totalorder %s19, 3
      %p270 = pnand %p268, %p269
      %p271 = pneg %p270
      // Predicated region
      $region9: #{tpu_custom_call.1} parent=5 // pred_check
        _
      $region10: #{tpu_custom_call.1} parent=5 // pred_check_branch
        %273 = sbr.rel (%p270) target = $region12
      $region11: #{tpu_custom_call.1} parent=5 // pred_region
        %s274 = ssub.s32 %s19, 1
        // Predicated region
        $region13: #{tpu_custom_call.1} parent=11 // pred_check
          %p275 = pneg %p106
        $region14: #{tpu_custom_call.1} parent=11 // pred_check_branch
          %277 = sbr.rel (%p275) target = $region16
        $region15: #{tpu_custom_call.1} parent=11 // pred_region
          _
        $region16: #{tpu_custom_call.1} parent=11 // pred_fallthru
          _
        // Predicated region
        $region17: #{tpu_custom_call.1} parent=11 // pred_check
          %p278 = pneg %p127
        $region18: #{tpu_custom_call.1} parent=11 // pred_check_branch
          %280 = sbr.rel (%p278) target = $region20
        $region19: #{tpu_custom_call.1} parent=11 // pred_region
          _
        $region20: #{tpu_custom_call.1} parent=11 // pred_fallthru
          _
        // Predicated region
        $region21: #{tpu_custom_call.1} parent=11 // pred_check
          %p281 = pneg %p148
        $region22: #{tpu_custom_call.1} parent=11 // pred_check_branch
          %283 = sbr.rel (%p281) target = $region24
        $region23: #{tpu_custom_call.1} parent=11 // pred_region
          _
        $region24: #{tpu_custom_call.1} parent=11 // pred_fallthru
          _
        // Predicated region
        $region25: #{tpu_custom_call.1} parent=11 // pred_check
          %p284 = pneg %p169
        $region26: #{tpu_custom_call.1} parent=11 // pred_check_branch
          %286 = sbr.rel (%p284) target = $region28
        $region27: #{tpu_custom_call.1} parent=11 // pred_region
          _
        $region28: #{tpu_custom_call.1} parent=11 // pred_fallthru
          _
        // Predicated region
        $region29: #{tpu_custom_call.1} parent=11 // pred_check
          %p287 = pneg %p190
        $region30: #{tpu_custom_call.1} parent=11 // pred_check_branch
          %289 = sbr.rel (%p287) target = $region32
        $region31: #{tpu_custom_call.1} parent=11 // pred_region
          _
        $region32: #{tpu_custom_call.1} parent=11 // pred_fallthru
          _
        // Predicated region
        $region33: #{tpu_custom_call.1} parent=11 // pred_check
          %p290 = pneg %p211
        $region34: #{tpu_custom_call.1} parent=11 // pred_check_branch
          %292 = sbr.rel (%p290) target = $region36
        $region35: #{tpu_custom_call.1} parent=11 // pred_region
          _
        $region36: #{tpu_custom_call.1} parent=11 // pred_fallthru
          _
        // Predicated region
        $region37: #{tpu_custom_call.1} parent=11 // pred_check
          %p293 = pneg %p232
        $region38: #{tpu_custom_call.1} parent=11 // pred_check_branch
          %295 = sbr.rel (%p293) target = $region40
        $region39: #{tpu_custom_call.1} parent=11 // pred_region
          _
        $region40: #{tpu_custom_call.1} parent=11 // pred_fallthru
          _
      $region12: #{tpu_custom_call.1} parent=5 // pred_fallthru
        _
      %p296 = scmp.lt.s32.totalorder %s19, 2
      // Predicated region
      $region41: #{tpu_custom_call.1} parent=5 // pred_check
        %p297 = pneg %p296
      $region42: #{tpu_custom_call.1} parent=5 // pred_check_branch
        %299 = sbr.rel (%p297) target = $region44
      $region43: #{tpu_custom_call.1} parent=5 // pred_region
        // Predicated region
        $region45: #{tpu_custom_call.1} parent=43 // pred_check
          %p300 = pneg %p53
        $region46: #{tpu_custom_call.1} parent=43 // pred_check_branch
          %302 = sbr.rel (%p300) target = $region48
        $region47: #{tpu_custom_call.1} parent=43 // pred_region
          %s303 = smul.u32 2, %s27
          %p304 = scmp.lt.s32.totalorder %s26, 1
          %s305 = scalar_select %p304, %s26, 1
          %p306 = scmp.lt.s32.totalorder %s303, 1
          %s307 = scalar_select %p306, %s303, 1
          %s308 = smul.addr %s305, 2
          %s309 = sadd.s32 %s307, %s308
          %s310 = smul.addr %s309, 4
          %s311 = scalar_lea.vmem %s0, %s310
          %s312 = smul.u32 2, %s27
        $region48: #{tpu_custom_call.1} parent=43 // pred_fallthru
          _
        // Predicated region
        $region49: #{tpu_custom_call.1} parent=43 // pred_check
          %p313 = pneg %p79
        $region50: #{tpu_custom_call.1} parent=43 // pred_check_branch
          %315 = sbr.rel (%p313) target = $region52
        $region51: #{tpu_custom_call.1} parent=43 // pred_region
          %p316 = scmp.lt.s32.totalorder %s26, 1
          %s317 = scalar_select %p316, %s26, 1
          %s318 = smul.addr %s317, 2
          %s319 = smul.addr %s318, 4
          %s320 = scalar_lea.vmem %s1, %s319
        $region52: #{tpu_custom_call.1} parent=43 // pred_fallthru
          _
      $region44: #{tpu_custom_call.1} parent=5 // pred_fallthru
        _
      %p321 = scmp.le.s32.totalorder 1, %s19
      %p322 = scmp.lt.s32.totalorder %s19, 3
      %p323 = pnand %p321, %p322
      %p324 = pneg %p323
      // Predicated region
      $region53: #{tpu_custom_call.1} parent=5 // pred_check
        _
      $region54: #{tpu_custom_call.1} parent=5 // pred_check_branch
        %326 = sbr.rel (%p323) target = $region56
      $region55: #{tpu_custom_call.1} parent=5 // pred_region
        %s327 = ssub.s32 %s19, 1
        %s328 = smul.u32 2, %s29
        %p329 = scmp.lt.s32.totalorder %s28, 1
        %s330 = scalar_select %p329, %s28, 1
        %p331 = scmp.lt.s32.totalorder %s328, 1
        %s332 = scalar_select %p331, %s328, 1
        %s333 = smul.addr %s330, 2
        %s334 = sadd.s32 %s332, %s333
        %s335 = smul.addr %s334, 4
        %s336 = scalar_lea.vmem %s0, %s335
        %p337 = pneg %p59
        %p338 = pneg %p56
        %p339 = scmp.lt.s32.totalorder %s28, 1
        %s340 = scalar_select %p339, %s28, 1
        %s341 = smul.addr %s340, 2
        %s342 = smul.addr %s341, 4
        %s343 = scalar_lea.vmem %s1, %s342
        %p344 = pneg %p85
        %p345 = pneg %p82
        %p346 = pneg %p106
        %p347 = pneg %p103
        %p348 = pneg %p127
        %p349 = pneg %p124
        %p350 = pneg %p148
        %p351 = pneg %p145
        %p352 = pneg %p169
        %p353 = pneg %p166
        %p354 = pneg %p190
        %p355 = pneg %p187
        %p356 = pneg %p211
        %p357 = pneg %p208
        %p358 = pneg %p232
        %p359 = pneg %p229
        %p360 = pneg %p260
        %p361 = pneg %p257
        %s362 = sand.u32 %s247, 1
        %s363 = scalar_lea.sflag [#allocation4], %s362
        %s364 = sand.u32 %s247, 1
        %s365 = smul.addr %s364, 16
        %s366 = scalar_lea.vmem [#allocation3], %s365
        %s367 = smul.u32 2, %s29
        %p368 = scmp.lt.s32.totalorder %s28, 1
        %s369 = scalar_select %p368, %s28, 1
        %p370 = scmp.lt.s32.totalorder %s367, 1
        %s371 = scalar_select %p370, %s367, 1
        %s372 = smul.addr %s369, 2
        %s373 = sadd.s32 %s371, %s372
        %s374 = smul.addr %s373, 4
        %s375 = scalar_lea.vmem %s0, %s374
        %s376 = smul.u32 2, %s29
        %p377 = scmp.lt.s32.totalorder %s28, 1
        %s378 = scalar_select %p377, %s28, 1
        %s379 = smul.addr %s378, 2
        %s380 = smul.addr %s379, 4
        %s381 = scalar_lea.vmem %s1, %s380
        %s382 = smul.u32 2, %s29
        %v384 = vld [vmem:[%s375] sm:$0xff]
        %v385 = vld [vmem:[%s381] sm:$0xff]
        %v386 = vld [vmem:[%s2] sm:$0xf]
        %v387 = vld [vmem:[%s3] sm:$0xf]
        %389 = vset.pattern.permute.xlu0 0
        %390 = vperm.xlu0 %389, %v387
        %v391 = vpop.permute.xlu0 %390
        %v394 = vcombine.high %v384, %v384
        %vm395 = vcmask 31744
        %v397 = vsel %vm395, %v386, 0
        %vm399 = vcmask 1043456
        %v400 = vsel %vm399, %v384, 0
        %v402 = vsel %vm399, %v394, 0
        %404 = vmatprep.subr.mxu0 0.0
        %405 = vmatpush1.msra.mxu0 0.0
        %406 = vmatprep.subr.mxu0 0.0
        %407 = vmatpush1.msra.mxu0 0.0
        %408 = vmatprep.subr.mxu0 0.0
        %409 = vmatpush1.msra.mxu0 0.0
        %410 = vmatprep.subr.mxu0 0.0
        %411 = vmatpush1.msra.mxu0 0.0
        %412 = vmatprep.subr.mxu0 0.0
        %413 = vmatpush1.msra.mxu0 0.0
        %414 = vmatprep.subr.mxu0 0.0
        %415 = vmatpush1.msra.mxu0 0.0
        %416 = vmatprep.subr.mxu0 0.0
        %417 = vmatpush1.msra.mxu0 0.0
        %418 = vmatprep.subr.mxu0 0.0
        %419 = vmatpush1.msra.mxu0 0.0
        %420 = vmatprep.subr.mxu0 0.0
        %421 = vmatpush1.msra.mxu0 0.0
        %422 = vmatprep.subr.mxu0 0.0
        %423 = vmatpush1.msra.mxu0 0.0
        %424 = vmatprep.subr.mxu0 0.0
        %425 = vmatpush1.msra.mxu0 0.0
        %426 = vmatprep.subr.mxu0 0.0
        %427 = vmatpush1.msra.mxu0 0.0
        %428 = vmatprep.subr.mxu0 0.0
        %429 = vmatpush1.msra.mxu0 0.0
        %430 = vmatprep.subr.mxu0 0.0
        %431 = vmatpush1.msra.mxu0 0.0
        %432 = vmatprep.subr.mxu0 0.0
        %433 = vmatpush1.msra.mxu0 0.0
        %434 = vmatprep.subr.mxu0 %v402
        %435 = vmatpush1.msra.mxu0 %v400
        %436 = vmatprep.subr.mxu0 0.0
        %437 = vmatpush2.msra.mxu0 0.0
        %438 = vmatprep.subr.mxu0 0.0
        %439 = vmatpush2.msra.mxu0 0.0
        %440 = vmatprep.subr.mxu0 0.0
        %441 = vmatpush2.msra.mxu0 0.0
        %442 = vmatprep.subr.mxu0 0.0
        %443 = vmatpush2.msra.mxu0 0.0
        %444 = vmatprep.subr.mxu0 0.0
        %445 = vmatpush2.msra.mxu0 0.0
        %446 = vmatprep.subr.mxu0 0.0
        %447 = vmatpush2.msra.mxu0 0.0
        %448 = vmatprep.subr.mxu0 0.0
        %449 = vmatpush2.msra.mxu0 0.0
        %450 = vmatprep.subr.mxu0 0.0
        %451 = vmatpush2.msra.mxu0 0.0
        %452 = vmatprep.subr.mxu0 0.0
        %453 = vmatpush2.msra.mxu0 0.0
        %454 = vmatprep.subr.mxu0 0.0
        %455 = vmatpush2.msra.mxu0 0.0
        %456 = vmatprep.subr.mxu0 0.0
        %457 = vmatpush2.msra.mxu0 0.0
        %458 = vmatprep.subr.mxu0 0.0
        %459 = vmatpush2.msra.mxu0 0.0
        %460 = vmatprep.subr.mxu0 0.0
        %461 = vmatpush2.msra.mxu0 0.0
        %462 = vmatprep.subr.mxu0 0.0
        %463 = vmatpush2.msra.mxu0 0.0
        %464 = vmatprep.subr.mxu0 0.0
        %465 = vmatpush2.msra.mxu0 0.0
        %466 = vmatprep.subr.mxu0 0.0
        %467 = vmatpush2.msra.mxu0 0.0
        %468 = vmatprep.mubr.f32.mxu0 0.0
        %469 = vmatmul.mubr.f32.gmra.mxu0 %v397
        %v470 = vpop.f32.mrf.mxu0
        %v471 = vadd.f32 %v391, %v470
        %v472 = vpop.f32.mrf.mxu0
        %v473 = vadd.f32 %v391, %v472
        %474 = vdwg.mxu0
        %v475 = vld [vmem:[%s4] sm:$0xff]
        %v476 = vld [vmem:[%s5] sm:$0xff]
        %478 = vset.pattern.permute.xlu0 0
        %479 = vperm.xlu0 %478, %v476
        %v480 = vpop.permute.xlu0 %479
        %v483 = vcombine.high %v385, %v385
        %v485 = vsel %vm395, %v475, 0
        %v487 = vsel %vm399, %v385, 0
        %v489 = vsel %vm399, %v483, 0
        %491 = vmatprep.subr.mxu0 0.0
        %492 = vmatpush1.msra.mxu0 0.0
        %493 = vmatprep.subr.mxu0 0.0
        %494 = vmatpush1.msra.mxu0 0.0
        %495 = vmatprep.subr.mxu0 0.0
        %496 = vmatpush1.msra.mxu0 0.0
        %497 = vmatprep.subr.mxu0 0.0
        %498 = vmatpush1.msra.mxu0 0.0
        %499 = vmatprep.subr.mxu0 0.0
        %500 = vmatpush1.msra.mxu0 0.0
        %501 = vmatprep.subr.mxu0 0.0
        %502 = vmatpush1.msra.mxu0 0.0
        %503 = vmatprep.subr.mxu0 0.0
        %504 = vmatpush1.msra.mxu0 0.0
        %505 = vmatprep.subr.mxu0 0.0
        %506 = vmatpush1.msra.mxu0 0.0
        %507 = vmatprep.subr.mxu0 0.0
        %508 = vmatpush1.msra.mxu0 0.0
        %509 = vmatprep.subr.mxu0 0.0
        %510 = vmatpush1.msra.mxu0 0.0
        %511 = vmatprep.subr.mxu0 0.0
        %512 = vmatpush1.msra.mxu0 0.0
        %513 = vmatprep.subr.mxu0 0.0
        %514 = vmatpush1.msra.mxu0 0.0
        %515 = vmatprep.subr.mxu0 0.0
        %516 = vmatpush1.msra.mxu0 0.0
        %517 = vmatprep.subr.mxu0 0.0
        %518 = vmatpush1.msra.mxu0 0.0
        %519 = vmatprep.subr.mxu0 0.0
        %520 = vmatpush1.msra.mxu0 0.0
        %521 = vmatprep.subr.mxu0 %v489
        %522 = vmatpush1.msra.mxu0 %v487
        %523 = vmatprep.subr.mxu0 0.0
        %524 = vmatpush2.msra.mxu0 0.0
        %525 = vmatprep.subr.mxu0 0.0
        %526 = vmatpush2.msra.mxu0 0.0
        %527 = vmatprep.subr.mxu0 0.0
        %528 = vmatpush2.msra.mxu0 0.0
        %529 = vmatprep.subr.mxu0 0.0
        %530 = vmatpush2.msra.mxu0 0.0
        %531 = vmatprep.subr.mxu0 0.0
        %532 = vmatpush2.msra.mxu0 0.0
        %533 = vmatprep.subr.mxu0 0.0
        %534 = vmatpush2.msra.mxu0 0.0
        %535 = vmatprep.subr.mxu0 0.0
        %536 = vmatpush2.msra.mxu0 0.0
        %537 = vmatprep.subr.mxu0 0.0
        %538 = vmatpush2.msra.mxu0 0.0
        %539 = vmatprep.subr.mxu0 0.0
        %540 = vmatpush2.msra.mxu0 0.0
        %541 = vmatprep.subr.mxu0 0.0
        %542 = vmatpush2.msra.mxu0 0.0
        %543 = vmatprep.subr.mxu0 0.0
        %544 = vmatpush2.msra.mxu0 0.0
        %545 = vmatprep.subr.mxu0 0.0
        %546 = vmatpush2.msra.mxu0 0.0
        %547 = vmatprep.subr.mxu0 0.0
        %548 = vmatpush2.msra.mxu0 0.0
        %549 = vmatprep.subr.mxu0 0.0
        %550 = vmatpush2.msra.mxu0 0.0
        %551 = vmatprep.subr.mxu0 0.0
        %552 = vmatpush2.msra.mxu0 0.0
        %553 = vmatprep.subr.mxu0 0.0
        %554 = vmatpush2.msra.mxu0 0.0
        %555 = vmatprep.mubr.f32.mxu0 0.0
        %556 = vmatmul.mubr.f32.gmra.mxu0 %v485
        %v557 = vpop.f32.mrf.mxu0
        %v558 = vadd.f32 %v480, %v557
        %v559 = vpop.f32.mrf.mxu0
        %v560 = vadd.f32 %v480, %v559
        %561 = vdwg.mxu0
        %v562 = vpack.c.bf16 %v471, %v471
        %v563 = vpack.c.bf16 %v473, %v473
        %v564 = vpack.c.bf16 %v558, %v558
        %v565 = vpack.c.bf16 %v560, %v560
        %566 = vxpose.xlu0.c.b16.start [1/8] %v562, 128
        %567 = vxpose.xlu0.c.b16.cont [2/8] 0, 128
        %568 = vxpose.xlu0.c.b16.cont [3/8] 0, 128
        %569 = vxpose.xlu0.c.b16.cont [4/8] 0, 128
        %570 = vxpose.xlu0.c.b16.cont [5/8] 0, 128
        %571 = vxpose.xlu0.c.b16.cont [6/8] 0, 128
        %572 = vxpose.xlu0.c.b16.cont [7/8] 0, 128
        %573 = vxpose.xlu0.c.b16.end [8/8] 0, 128
        %v574 = vpop.trf.xlu0
        %v575 = vpop.trf.xlu0
        %v576 = vpop.trf.xlu0
        %v577 = vpop.trf.xlu0
        %v578 = vpop.trf.xlu0
        %v579 = vpop.trf.xlu0
        %v580 = vpop.trf.xlu0
        %v581 = vpop.trf.xlu0
        %582 = vxpose.xlu0.c.b16.start [1/8] %v563, 128
        %583 = vxpose.xlu0.c.b16.cont [2/8] 0, 128
        %584 = vxpose.xlu0.c.b16.cont [3/8] 0, 128
        %585 = vxpose.xlu0.c.b16.cont [4/8] 0, 128
        %586 = vxpose.xlu0.c.b16.cont [5/8] 0, 128
        %587 = vxpose.xlu0.c.b16.cont [6/8] 0, 128
        %588 = vxpose.xlu0.c.b16.cont [7/8] 0, 128
        %589 = vxpose.xlu0.c.b16.end [8/8] 0, 128
        %v590 = vpop.trf.xlu0
        %v591 = vpop.trf.xlu0
        %v592 = vpop.trf.xlu0
        %v593 = vpop.trf.xlu0
        %v594 = vpop.trf.xlu0
        %v595 = vpop.trf.xlu0
        %v596 = vpop.trf.xlu0
        %v597 = vpop.trf.xlu0
        %v599 = vsel %vm395, %v574, 0
        %v602 = vsel %vm395, %v575, 0
        %v605 = vsel %vm395, %v576, 0
        %v608 = vsel %vm395, %v577, 0
        %v611 = vsel %vm395, %v578, 0
        %v614 = vsel %vm395, %v579, 0
        %v617 = vsel %vm395, %v580, 0
        %v620 = vsel %vm395, %v581, 0
        %v623 = vsel %vm395, %v590, 0
        %v626 = vsel %vm395, %v591, 0
        %v629 = vsel %vm395, %v592, 0
        %v632 = vsel %vm395, %v593, 0
        %v635 = vsel %vm395, %v594, 0
        %v638 = vsel %vm395, %v595, 0
        %v641 = vsel %vm395, %v596, 0
        %v644 = vsel %vm395, %v597, 0
        %vm646 = vcmask 1041408
        %v648 = vsel %vm646, %v564, 0
        %v651 = vsel %vm646, %v565, 0
        %653 = vmatprep.subr.bf16.mxu0 0
        %654 = vmatpush1.bf16.msra.mxu0 0
        %655 = vmatprep.subr.bf16.mxu0 0
        %656 = vmatpush1.bf16.msra.mxu0 0
        %657 = vmatprep.subr.bf16.mxu0 0
        %658 = vmatpush1.bf16.msra.mxu0 0
        %659 = vmatprep.subr.bf16.mxu0 0
        %660 = vmatpush1.bf16.msra.mxu0 0
        %661 = vmatprep.subr.bf16.mxu0 0
        %662 = vmatpush1.bf16.msra.mxu0 0
        %663 = vmatprep.subr.bf16.mxu0 0
        %664 = vmatpush1.bf16.msra.mxu0 0
        %665 = vmatprep.subr.bf16.mxu0 0
        %666 = vmatpush1.bf16.msra.mxu0 0
        %667 = vmatprep.subr.bf16.mxu0 %v651
        %668 = vmatpush1.bf16.msra.mxu0 %v648
        %669 = vmatprep.subr.bf16.mxu0 0
        %670 = vmatpush2.bf16.msra.mxu0 0
        %671 = vmatprep.subr.bf16.mxu0 0
        %672 = vmatpush2.bf16.msra.mxu0 0
        %673 = vmatprep.subr.bf16.mxu0 0
        %674 = vmatpush2.bf16.msra.mxu0 0
        %675 = vmatprep.subr.bf16.mxu0 0
        %676 = vmatpush2.bf16.msra.mxu0 0
        %677 = vmatprep.subr.bf16.mxu0 0
        %678 = vmatpush2.bf16.msra.mxu0 0
        %679 = vmatprep.subr.bf16.mxu0 0
        %680 = vmatpush2.bf16.msra.mxu0 0
        %681 = vmatprep.subr.bf16.mxu0 0
        %682 = vmatpush2.bf16.msra.mxu0 0
        %683 = vmatprep.subr.bf16.mxu0 0
        %684 = vmatpush2.bf16.msra.mxu0 0
        %685 = vmatprep.mubr.bf16.mxu0 0
        %686 = vmatmul.mubr.bf16.gmra.mxu0 %v599
        %v687 = vpop.f32.mrf.mxu0
        %v688 = vadd.f32 0.0, %v687
        %v689 = vpop.f32.mrf.mxu0
        %v690 = vadd.f32 0.0, %v689
        %v691 = vpop.f32.mrf.mxu0
        %v692 = vadd.f32 0.0, %v691
        %v693 = vpop.f32.mrf.mxu0
        %v694 = vadd.f32 0.0, %v693
        %695 = vmatprep.mubr.bf16.mxu0 0
        %696 = vmatmul.mubr.bf16.gmra.mxu0 %v602
        %v697 = vpop.f32.mrf.mxu0
        %v698 = vadd.f32 0.0, %v697
        %v699 = vpop.f32.mrf.mxu0
        %v700 = vadd.f32 0.0, %v699
        %v701 = vpop.f32.mrf.mxu0
        %v702 = vadd.f32 0.0, %v701
        %v703 = vpop.f32.mrf.mxu0
        %v704 = vadd.f32 0.0, %v703
        %705 = vmatprep.mubr.bf16.mxu0 0
        %706 = vmatmul.mubr.bf16.gmra.mxu0 %v605
        %v707 = vpop.f32.mrf.mxu0
        %v708 = vadd.f32 0.0, %v707
        %v709 = vpop.f32.mrf.mxu0
        %v710 = vadd.f32 0.0, %v709
        %v711 = vpop.f32.mrf.mxu0
        %v712 = vadd.f32 0.0, %v711
        %v713 = vpop.f32.mrf.mxu0
        %v714 = vadd.f32 0.0, %v713
        %715 = vmatprep.mubr.bf16.mxu0 0
        %716 = vmatmul.mubr.bf16.gmra.mxu0 %v608
        %v717 = vpop.f32.mrf.mxu0
        %v718 = vadd.f32 0.0, %v717
        %v719 = vpop.f32.mrf.mxu0
        %v720 = vadd.f32 0.0, %v719
        %v721 = vpop.f32.mrf.mxu0
        %v722 = vadd.f32 0.0, %v721
        %v723 = vpop.f32.mrf.mxu0
        %v724 = vadd.f32 0.0, %v723
        %725 = vmatprep.mubr.bf16.mxu0 0
        %726 = vmatmul.mubr.bf16.gmra.mxu0 %v611
        %v727 = vpop.f32.mrf.mxu0
        %v728 = vadd.f32 0.0, %v727
        %v729 = vpop.f32.mrf.mxu0
        %v730 = vadd.f32 0.0, %v729
        %v731 = vpop.f32.mrf.mxu0
        %v732 = vadd.f32 0.0, %v731
        %v733 = vpop.f32.mrf.mxu0
        %v734 = vadd.f32 0.0, %v733
        %735 = vmatprep.mubr.bf16.mxu0 0
        %736 = vmatmul.mubr.bf16.gmra.mxu0 %v614
        %v737 = vpop.f32.mrf.mxu0
        %v738 = vadd.f32 0.0, %v737
        %v739 = vpop.f32.mrf.mxu0
        %v740 = vadd.f32 0.0, %v739
        %v741 = vpop.f32.mrf.mxu0
        %v742 = vadd.f32 0.0, %v741
        %v743 = vpop.f32.mrf.mxu0
        %v744 = vadd.f32 0.0, %v743
        %745 = vmatprep.mubr.bf16.mxu0 0
        %746 = vmatmul.mubr.bf16.gmra.mxu0 %v617
        %v747 = vpop.f32.mrf.mxu0
        %v748 = vadd.f32 0.0, %v747
        %v749 = vpop.f32.mrf.mxu0
        %v750 = vadd.f32 0.0, %v749
        %v751 = vpop.f32.mrf.mxu0
        %v752 = vadd.f32 0.0, %v751
        %v753 = vpop.f32.mrf.mxu0
        %v754 = vadd.f32 0.0, %v753
        %755 = vmatprep.mubr.bf16.mxu0 0
        %756 = vmatmul.mubr.bf16.gmra.mxu0 %v620
        %v757 = vpop.f32.mrf.mxu0
        %v758 = vadd.f32 0.0, %v757
        %v759 = vpop.f32.mrf.mxu0
        %v760 = vadd.f32 0.0, %v759
        %v761 = vpop.f32.mrf.mxu0
        %v762 = vadd.f32 0.0, %v761
        %v763 = vpop.f32.mrf.mxu0
        %v764 = vadd.f32 0.0, %v763
        %765 = vmatprep.mubr.bf16.mxu0 0
        %766 = vmatmul.mubr.bf16.gmra.mxu0 %v623
        %v767 = vpop.f32.mrf.mxu0
        %v768 = vadd.f32 0.0, %v767
        %v769 = vpop.f32.mrf.mxu0
        %v770 = vadd.f32 0.0, %v769
        %v771 = vpop.f32.mrf.mxu0
        %v772 = vadd.f32 0.0, %v771
        %v773 = vpop.f32.mrf.mxu0
        %v774 = vadd.f32 0.0, %v773
        %775 = vmatprep.mubr.bf16.mxu0 0
        %776 = vmatmul.mubr.bf16.gmra.mxu0 %v626
        %v777 = vpop.f32.mrf.mxu0
        %v778 = vadd.f32 0.0, %v777
        %v779 = vpop.f32.mrf.mxu0
        %v780 = vadd.f32 0.0, %v779
        %v781 = vpop.f32.mrf.mxu0
        %v782 = vadd.f32 0.0, %v781
        %v783 = vpop.f32.mrf.mxu0
        %v784 = vadd.f32 0.0, %v783
        %785 = vmatprep.mubr.bf16.mxu0 0
        %786 = vmatmul.mubr.bf16.gmra.mxu0 %v629
        %v787 = vpop.f32.mrf.mxu0
        %v788 = vadd.f32 0.0, %v787
        %v789 = vpop.f32.mrf.mxu0
        %v790 = vadd.f32 0.0, %v789
        %v791 = vpop.f32.mrf.mxu0
        %v792 = vadd.f32 0.0, %v791
        %v793 = vpop.f32.mrf.mxu0
        %v794 = vadd.f32 0.0, %v793
        %795 = vmatprep.mubr.bf16.mxu0 0
        %796 = vmatmul.mubr.bf16.gmra.mxu0 %v632
        %v797 = vpop.f32.mrf.mxu0
        %v798 = vadd.f32 0.0, %v797
        %v799 = vpop.f32.mrf.mxu0
        %v800 = vadd.f32 0.0, %v799
        %v801 = vpop.f32.mrf.mxu0
        %v802 = vadd.f32 0.0, %v801
        %v803 = vpop.f32.mrf.mxu0
        %v804 = vadd.f32 0.0, %v803
        %805 = vmatprep.mubr.bf16.mxu0 0
        %806 = vmatmul.mubr.bf16.gmra.mxu0 %v635
        %v807 = vpop.f32.mrf.mxu0
        %v808 = vadd.f32 0.0, %v807
        %v809 = vpop.f32.mrf.mxu0
        %v810 = vadd.f32 0.0, %v809
        %v811 = vpop.f32.mrf.mxu0
        %v812 = vadd.f32 0.0, %v811
        %v813 = vpop.f32.mrf.mxu0
        %v814 = vadd.f32 0.0, %v813
        %815 = vmatprep.mubr.bf16.mxu0 0
        %816 = vmatmul.mubr.bf16.gmra.mxu0 %v638
        %v817 = vpop.f32.mrf.mxu0
        %v818 = vadd.f32 0.0, %v817
        %v819 = vpop.f32.mrf.mxu0
        %v820 = vadd.f32 0.0, %v819
        %v821 = vpop.f32.mrf.mxu0
        %v822 = vadd.f32 0.0, %v821
        %v823 = vpop.f32.mrf.mxu0
        %v824 = vadd.f32 0.0, %v823
        %825 = vmatprep.mubr.bf16.mxu0 0
        %826 = vmatmul.mubr.bf16.gmra.mxu0 %v641
        %v827 = vpop.f32.mrf.mxu0
        %v828 = vadd.f32 0.0, %v827
        %v829 = vpop.f32.mrf.mxu0
        %v830 = vadd.f32 0.0, %v829
        %v831 = vpop.f32.mrf.mxu0
        %v832 = vadd.f32 0.0, %v831
        %v833 = vpop.f32.mrf.mxu0
        %v834 = vadd.f32 0.0, %v833
        %835 = vmatprep.mubr.bf16.mxu0 0
        %836 = vmatmul.mubr.bf16.gmra.mxu0 %v644
        %v837 = vpop.f32.mrf.mxu0
        %v838 = vadd.f32 0.0, %v837
        %v839 = vpop.f32.mrf.mxu0
        %v840 = vadd.f32 0.0, %v839
        %v841 = vpop.f32.mrf.mxu0
        %v842 = vadd.f32 0.0, %v841
        %v843 = vpop.f32.mrf.mxu0
        %v844 = vadd.f32 0.0, %v843
        %845 = vdwg.mxu0
        %v846 = vmax.f32 %v688, %v690
        %847 = vmax.xlane.f32.xlu0 %v846
        %v848 = vpop.xlane.xlu0 %847
        %v849 = vmax.f32 %v692, %v694
        %850 = vmax.xlane.f32.xlu0 %v849
        %v851 = vpop.xlane.xlu0 %850
        %v852 = vmax.f32 %v698, %v700
        %853 = vmax.xlane.f32.xlu0 %v852
        %v854 = vpop.xlane.xlu0 %853
        %v855 = vmax.f32 %v702, %v704
        %856 = vmax.xlane.f32.xlu0 %v855
        %v857 = vpop.xlane.xlu0 %856
        %v858 = vmax.f32 %v708, %v710
        %859 = vmax.xlane.f32.xlu0 %v858
        %v860 = vpop.xlane.xlu0 %859
        %v861 = vmax.f32 %v712, %v714
        %862 = vmax.xlane.f32.xlu0 %v861
        %v863 = vpop.xlane.xlu0 %862
        %v864 = vmax.f32 %v718, %v720
        %865 = vmax.xlane.f32.xlu0 %v864
        %v866 = vpop.xlane.xlu0 %865
        %v867 = vmax.f32 %v722, %v724
        %868 = vmax.xlane.f32.xlu0 %v867
        %v869 = vpop.xlane.xlu0 %868
        %v870 = vmax.f32 %v728, %v730
        %871 = vmax.xlane.f32.xlu0 %v870
        %v872 = vpop.xlane.xlu0 %871
        %v873 = vmax.f32 %v732, %v734
        %874 = vmax.xlane.f32.xlu0 %v873
        %v875 = vpop.xlane.xlu0 %874
        %v876 = vmax.f32 %v738, %v740
        %877 = vmax.xlane.f32.xlu0 %v876
        %v878 = vpop.xlane.xlu0 %877
        %v879 = vmax.f32 %v742, %v744
        %880 = vmax.xlane.f32.xlu0 %v879
        %v881 = vpop.xlane.xlu0 %880
        %v882 = vmax.f32 %v748, %v750
        %883 = vmax.xlane.f32.xlu0 %v882
        %v884 = vpop.xlane.xlu0 %883
        %v885 = vmax.f32 %v752, %v754
        %886 = vmax.xlane.f32.xlu0 %v885
        %v887 = vpop.xlane.xlu0 %886
        %v888 = vmax.f32 %v758, %v760
        %889 = vmax.xlane.f32.xlu0 %v888
        %v890 = vpop.xlane.xlu0 %889
        %v891 = vmax.f32 %v762, %v764
        %892 = vmax.xlane.f32.xlu0 %v891
        %v893 = vpop.xlane.xlu0 %892
        %v894 = vmax.f32 %v768, %v770
        %895 = vmax.xlane.f32.xlu0 %v894
        %v896 = vpop.xlane.xlu0 %895
        %v897 = vmax.f32 %v772, %v774
        %898 = vmax.xlane.f32.xlu0 %v897
        %v899 = vpop.xlane.xlu0 %898
        %v900 = vmax.f32 %v778, %v780
        %901 = vmax.xlane.f32.xlu0 %v900
        %v902 = vpop.xlane.xlu0 %901
        %v903 = vmax.f32 %v782, %v784
        %904 = vmax.xlane.f32.xlu0 %v903
        %v905 = vpop.xlane.xlu0 %904
        %v906 = vmax.f32 %v788, %v790
        %907 = vmax.xlane.f32.xlu0 %v906
        %v908 = vpop.xlane.xlu0 %907
        %v909 = vmax.f32 %v792, %v794
        %910 = vmax.xlane.f32.xlu0 %v909
        %v911 = vpop.xlane.xlu0 %910
        %v912 = vmax.f32 %v798, %v800
        %913 = vmax.xlane.f32.xlu0 %v912
        %v914 = vpop.xlane.xlu0 %913
        %v915 = vmax.f32 %v802, %v804
        %916 = vmax.xlane.f32.xlu0 %v915
        %v917 = vpop.xlane.xlu0 %916
        %v918 = vmax.f32 %v808, %v810
        %919 = vmax.xlane.f32.xlu0 %v918
        %v920 = vpop.xlane.xlu0 %919
        %v921 = vmax.f32 %v812, %v814
        %922 = vmax.xlane.f32.xlu0 %v921
        %v923 = vpop.xlane.xlu0 %922
        %v924 = vmax.f32 %v818, %v820
        %925 = vmax.xlane.f32.xlu0 %v924
        %v926 = vpop.xlane.xlu0 %925
        %v927 = vmax.f32 %v822, %v824
        %928 = vmax.xlane.f32.xlu0 %v927
        %v929 = vpop.xlane.xlu0 %928
        %v930 = vmax.f32 %v828, %v830
        %931 = vmax.xlane.f32.xlu0 %v930
        %v932 = vpop.xlane.xlu0 %931
        %v933 = vmax.f32 %v832, %v834
        %934 = vmax.xlane.f32.xlu0 %v933
        %v935 = vpop.xlane.xlu0 %934
        %v936 = vmax.f32 %v838, %v840
        %937 = vmax.xlane.f32.xlu0 %v936
        %v938 = vpop.xlane.xlu0 %937
        %v939 = vmax.f32 %v842, %v844
        %940 = vmax.xlane.f32.xlu0 %v939
        %v941 = vpop.xlane.xlu0 %940
        %v942 = vsub.f32 %v688, %v848
        %v943 = vsub.f32 %v690, %v848
        %v944 = vsub.f32 %v692, %v851
        %v945 = vsub.f32 %v694, %v851
        %v946 = vsub.f32 %v698, %v854
        %v947 = vsub.f32 %v700, %v854
        %v948 = vsub.f32 %v702, %v857
        %v949 = vsub.f32 %v704, %v857
        %v950 = vsub.f32 %v708, %v860
        %v951 = vsub.f32 %v710, %v860
        %v952 = vsub.f32 %v712, %v863
        %v953 = vsub.f32 %v714, %v863
        %v954 = vsub.f32 %v718, %v866
        %v955 = vsub.f32 %v720, %v866
        %v956 = vsub.f32 %v722, %v869
        %v957 = vsub.f32 %v724, %v869
        %v958 = vsub.f32 %v728, %v872
        %v959 = vsub.f32 %v730, %v872
        %v960 = vsub.f32 %v732, %v875
        %v961 = vsub.f32 %v734, %v875
        %v962 = vsub.f32 %v738, %v878
        %v963 = vsub.f32 %v740, %v878
        %v964 = vsub.f32 %v742, %v881
        %v965 = vsub.f32 %v744, %v881
        %v966 = vsub.f32 %v748, %v884
        %v967 = vsub.f32 %v750, %v884
        %v968 = vsub.f32 %v752, %v887
        %v969 = vsub.f32 %v754, %v887
        %v970 = vsub.f32 %v758, %v890
        %v971 = vsub.f32 %v760, %v890
        %v972 = vsub.f32 %v762, %v893
        %v973 = vsub.f32 %v764, %v893
        %v974 = vsub.f32 %v768, %v896
        %v975 = vsub.f32 %v770, %v896
        %v976 = vsub.f32 %v772, %v899
        %v977 = vsub.f32 %v774, %v899
        %v978 = vsub.f32 %v778, %v902
        %v979 = vsub.f32 %v780, %v902
        %v980 = vsub.f32 %v782, %v905
        %v981 = vsub.f32 %v784, %v905
        %v982 = vsub.f32 %v788, %v908
        %v983 = vsub.f32 %v790, %v908
        %v984 = vsub.f32 %v792, %v911
        %v985 = vsub.f32 %v794, %v911
        %v986 = vsub.f32 %v798, %v914
        %v987 = vsub.f32 %v800, %v914
        %v988 = vsub.f32 %v802, %v917
        %v989 = vsub.f32 %v804, %v917
        %v990 = vsub.f32 %v808, %v920
        %v991 = vsub.f32 %v810, %v920
        %v992 = vsub.f32 %v812, %v923
        %v993 = vsub.f32 %v814, %v923
        %v994 = vsub.f32 %v818, %v926
        %v995 = vsub.f32 %v820, %v926
        %v996 = vsub.f32 %v822, %v929
        %v997 = vsub.f32 %v824, %v929
        %v998 = vsub.f32 %v828, %v932
        %v999 = vsub.f32 %v830, %v932
        %v1000 = vsub.f32 %v832, %v935
        %v1001 = vsub.f32 %v834, %v935
        %v1002 = vsub.f32 %v838, %v938
        %v1003 = vsub.f32 %v840, %v938
        %v1004 = vsub.f32 %v842, %v941
        %v1005 = vsub.f32 %v844, %v941
        %v1006 = vmul.f32 %v942, 1.442695
        %v1007 = vpow.pop %v1006
        %v1008 = vmul.f32 %v943, 1.442695
        %v1009 = vpow.pop %v1008
        %v1010 = vmul.f32 %v944, 1.442695
        %v1011 = vpow.pop %v1010
        %v1012 = vmul.f32 %v945, 1.442695
        %v1013 = vpow.pop %v1012
        %v1014 = vmul.f32 %v946, 1.442695
        %v1015 = vpow.pop %v1014
        %v1016 = vmul.f32 %v947, 1.442695
        %v1017 = vpow.pop %v1016
        %v1018 = vmul.f32 %v948, 1.442695
        %v1019 = vpow.pop %v1018
        %v1020 = vmul.f32 %v949, 1.442695
        %v1021 = vpow.pop %v1020
        %v1022 = vmul.f32 %v950, 1.442695
        %v1023 = vpow.pop %v1022
        %v1024 = vmul.f32 %v951, 1.442695
        %v1025 = vpow.pop %v1024
        %v1026 = vmul.f32 %v952, 1.442695
        %v1027 = vpow.pop %v1026
        %v1028 = vmul.f32 %v953, 1.442695
        %v1029 = vpow.pop %v1028
        %v1030 = vmul.f32 %v954, 1.442695
        %v1031 = vpow.pop %v1030
        %v1032 = vmul.f32 %v955, 1.442695
        %v1033 = vpow.pop %v1032
        %v1034 = vmul.f32 %v956, 1.442695
        %v1035 = vpow.pop %v1034
        %v1036 = vmul.f32 %v957, 1.442695
        %v1037 = vpow.pop %v1036
        %v1038 = vmul.f32 %v958, 1.442695
        %v1039 = vpow.pop %v1038
        %v1040 = vmul.f32 %v959, 1.442695
        %v1041 = vpow.pop %v1040
        %v1042 = vmul.f32 %v960, 1.442695
        %v1043 = vpow.pop %v1042
        %v1044 = vmul.f32 %v961, 1.442695
        %v1045 = vpow.pop %v1044
        %v1046 = vmul.f32 %v962, 1.442695
        %v1047 = vpow.pop %v1046
        %v1048 = vmul.f32 %v963, 1.442695
        %v1049 = vpow.pop %v1048
        %v1050 = vmul.f32 %v964, 1.442695
        %v1051 = vpow.pop %v1050
        %v1052 = vmul.f32 %v965, 1.442695
        %v1053 = vpow.pop %v1052
        %v1054 = vmul.f32 %v966, 1.442695
        %v1055 = vpow.pop %v1054
        %v1056 = vmul.f32 %v967, 1.442695
        %v1057 = vpow.pop %v1056
        %v1058 = vmul.f32 %v968, 1.442695
        %v1059 = vpow.pop %v1058
        %v1060 = vmul.f32 %v969, 1.442695
        %v1061 = vpow.pop %v1060
        %v1062 = vmul.f32 %v970, 1.442695
        %v1063 = vpow.pop %v1062
        %v1064 = vmul.f32 %v971, 1.442695
        %v1065 = vpow.pop %v1064
        %v1066 = vmul.f32 %v972, 1.442695
        %v1067 = vpow.pop %v1066
        %v1068 = vmul.f32 %v973, 1.442695
        %v1069 = vpow.pop %v1068
        %v1070 = vmul.f32 %v974, 1.442695
        %v1071 = vpow.pop %v1070
        %v1072 = vmul.f32 %v975, 1.442695
        %v1073 = vpow.pop %v1072
        %v1074 = vmul.f32 %v976, 1.442695
        %v1075 = vpow.pop %v1074
        %v1076 = vmul.f32 %v977, 1.442695
        %v1077 = vpow.pop %v1076
        %v1078 = vmul.f32 %v978, 1.442695
        %v1079 = vpow.pop %v1078
        %v1080 = vmul.f32 %v979, 1.442695
        %v1081 = vpow.pop %v1080
        %v1082 = vmul.f32 %v980, 1.442695
        %v1083 = vpow.pop %v1082
        %v1084 = vmul.f32 %v981, 1.442695
        %v1085 = vpow.pop %v1084
        %v1086 = vmul.f32 %v982, 1.442695
        %v1087 = vpow.pop %v1086
        %v1088 = vmul.f32 %v983, 1.442695
        %v1089 = vpow.pop %v1088
        %v1090 = vmul.f32 %v984, 1.442695
        %v1091 = vpow.pop %v1090
        %v1092 = vmul.f32 %v985, 1.442695
        %v1093 = vpow.pop %v1092
        %v1094 = vmul.f32 %v986, 1.442695
        %v1095 = vpow.pop %v1094
        %v1096 = vmul.f32 %v987, 1.442695
        %v1097 = vpow.pop %v1096
        %v1098 = vmul.f32 %v988, 1.442695
        %v1099 = vpow.pop %v1098
        %v1100 = vmul.f32 %v989, 1.442695
        %v1101 = vpow.pop %v1100
        %v1102 = vmul.f32 %v990, 1.442695
        %v1103 = vpow.pop %v1102
        %v1104 = vmul.f32 %v991, 1.442695
        %v1105 = vpow.pop %v1104
        %v1106 = vmul.f32 %v992, 1.442695
        %v1107 = vpow.pop %v1106
        %v1108 = vmul.f32 %v993, 1.442695
        %v1109 = vpow.pop %v1108
        %v1110 = vmul.f32 %v994, 1.442695
        %v1111 = vpow.pop %v1110
        %v1112 = vmul.f32 %v995, 1.442695
        %v1113 = vpow.pop %v1112
        %v1114 = vmul.f32 %v996, 1.442695
        %v1115 = vpow.pop %v1114
        %v1116 = vmul.f32 %v997, 1.442695
        %v1117 = vpow.pop %v1116
        %v1118 = vmul.f32 %v998, 1.442695
        %v1119 = vpow.pop %v1118
        %v1120 = vmul.f32 %v999, 1.442695
        %v1121 = vpow.pop %v1120
        %v1122 = vmul.f32 %v1000, 1.442695
        %v1123 = vpow.pop %v1122
        %v1124 = vmul.f32 %v1001, 1.442695
        %v1125 = vpow.pop %v1124
        %v1126 = vmul.f32 %v1002, 1.442695
        %v1127 = vpow.pop %v1126
        %v1128 = vmul.f32 %v1003, 1.442695
        %v1129 = vpow.pop %v1128
        %v1130 = vmul.f32 %v1004, 1.442695
        %v1131 = vpow.pop %v1130
        %v1132 = vmul.f32 %v1005, 1.442695
        %v1133 = vpow.pop %v1132
        %v1134 = vadd.f32 %v1007, %v1009
        %1135 = vadd.xlane.f32.xlu0 %v1134
        %v1136 = vpop.xlane.xlu0 %1135
        %v1137 = vadd.f32 %v1011, %v1013
        %1138 = vadd.xlane.f32.xlu0 %v1137
        %v1139 = vpop.xlane.xlu0 %1138
        %v1140 = vadd.f32 %v1015, %v1017
        %1141 = vadd.xlane.f32.xlu0 %v1140
        %v1142 = vpop.xlane.xlu0 %1141
        %v1143 = vadd.f32 %v1019, %v1021
        %1144 = vadd.xlane.f32.xlu0 %v1143
        %v1145 = vpop.xlane.xlu0 %1144
        %v1146 = vadd.f32 %v1023, %v1025
        %1147 = vadd.xlane.f32.xlu0 %v1146
        %v1148 = vpop.xlane.xlu0 %1147
        %v1149 = vadd.f32 %v1027, %v1029
        %1150 = vadd.xlane.f32.xlu0 %v1149
        %v1151 = vpop.xlane.xlu0 %1150
        %v1152 = vadd.f32 %v1031, %v1033
        %1153 = vadd.xlane.f32.xlu0 %v1152
        %v1154 = vpop.xlane.xlu0 %1153
        %v1155 = vadd.f32 %v1035, %v1037
        %1156 = vadd.xlane.f32.xlu0 %v1155
        %v1157 = vpop.xlane.xlu0 %1156
        %v1158 = vadd.f32 %v1039, %v1041
        %1159 = vadd.xlane.f32.xlu0 %v1158
        %v1160 = vpop.xlane.xlu0 %1159
        %v1161 = vadd.f32 %v1043, %v1045
        %1162 = vadd.xlane.f32.xlu0 %v1161
        %v1163 = vpop.xlane.xlu0 %1162
        %v1164 = vadd.f32 %v1047, %v1049
        %1165 = vadd.xlane.f32.xlu0 %v1164
        %v1166 = vpop.xlane.xlu0 %1165
        %v1167 = vadd.f32 %v1051, %v1053
        %1168 = vadd.xlane.f32.xlu0 %v1167
        %v1169 = vpop.xlane.xlu0 %1168
        %v1170 = vadd.f32 %v1055, %v1057
        %1171 = vadd.xlane.f32.xlu0 %v1170
        %v1172 = vpop.xlane.xlu0 %1171
        %v1173 = vadd.f32 %v1059, %v1061
        %1174 = vadd.xlane.f32.xlu0 %v1173
        %v1175 = vpop.xlane.xlu0 %1174
        %v1176 = vadd.f32 %v1063, %v1065
        %1177 = vadd.xlane.f32.xlu0 %v1176
        %v1178 = vpop.xlane.xlu0 %1177
        %v1179 = vadd.f32 %v1067, %v1069
        %1180 = vadd.xlane.f32.xlu0 %v1179
        %v1181 = vpop.xlane.xlu0 %1180
        %v1182 = vadd.f32 %v1071, %v1073
        %1183 = vadd.xlane.f32.xlu0 %v1182
        %v1184 = vpop.xlane.xlu0 %1183
        %v1185 = vadd.f32 %v1075, %v1077
        %1186 = vadd.xlane.f32.xlu0 %v1185
        %v1187 = vpop.xlane.xlu0 %1186
        %v1188 = vadd.f32 %v1079, %v1081
        %1189 = vadd.xlane.f32.xlu0 %v1188
        %v1190 = vpop.xlane.xlu0 %1189
        %v1191 = vadd.f32 %v1083, %v1085
        %1192 = vadd.xlane.f32.xlu0 %v1191
        %v1193 = vpop.xlane.xlu0 %1192
        %v1194 = vadd.f32 %v1087, %v1089
        %1195 = vadd.xlane.f32.xlu0 %v1194
        %v1196 = vpop.xlane.xlu0 %1195
        %v1197 = vadd.f32 %v1091, %v1093
        %1198 = vadd.xlane.f32.xlu0 %v1197
        %v1199 = vpop.xlane.xlu0 %1198
        %v1200 = vadd.f32 %v1095, %v1097
        %1201 = vadd.xlane.f32.xlu0 %v1200
        %v1202 = vpop.xlane.xlu0 %1201
        %v1203 = vadd.f32 %v1099, %v1101
        %1204 = vadd.xlane.f32.xlu0 %v1203
        %v1205 = vpop.xlane.xlu0 %1204
        %v1206 = vadd.f32 %v1103, %v1105
        %1207 = vadd.xlane.f32.xlu0 %v1206
        %v1208 = vpop.xlane.xlu0 %1207
        %v1209 = vadd.f32 %v1107, %v1109
        %1210 = vadd.xlane.f32.xlu0 %v1209
        %v1211 = vpop.xlane.xlu0 %1210
        %v1212 = vadd.f32 %v1111, %v1113
        %1213 = vadd.xlane.f32.xlu0 %v1212
        %v1214 = vpop.xlane.xlu0 %1213
        %v1215 = vadd.f32 %v1115, %v1117
        %1216 = vadd.xlane.f32.xlu0 %v1215
        %v1217 = vpop.xlane.xlu0 %1216
        %v1218 = vadd.f32 %v1119, %v1121
        %1219 = vadd.xlane.f32.xlu0 %v1218
        %v1220 = vpop.xlane.xlu0 %1219
        %v1221 = vadd.f32 %v1123, %v1125
        %1222 = vadd.xlane.f32.xlu0 %v1221
        %v1223 = vpop.xlane.xlu0 %1222
        %v1224 = vadd.f32 %v1127, %v1129
        %1225 = vadd.xlane.f32.xlu0 %v1224
        %v1226 = vpop.xlane.xlu0 %1225
        %v1227 = vadd.f32 %v1131, %v1133
        %1228 = vadd.xlane.f32.xlu0 %v1227
        %v1229 = vpop.xlane.xlu0 %1228
        %v1230 = vrcp.pop %v1136
        %v1231 = vrcp.pop %v1139
        %v1232 = vrcp.pop %v1142
        %v1233 = vrcp.pop %v1145
        %v1234 = vrcp.pop %v1148
        %v1235 = vrcp.pop %v1151
        %v1236 = vrcp.pop %v1154
        %v1237 = vrcp.pop %v1157
        %v1238 = vrcp.pop %v1160
        %v1239 = vrcp.pop %v1163
        %v1240 = vrcp.pop %v1166
        %v1241 = vrcp.pop %v1169
        %v1242 = vrcp.pop %v1172
        %v1243 = vrcp.pop %v1175
        %v1244 = vrcp.pop %v1178
        %v1245 = vrcp.pop %v1181
        %v1246 = vrcp.pop %v1184
        %v1247 = vrcp.pop %v1187
        %v1248 = vrcp.pop %v1190
        %v1249 = vrcp.pop %v1193
        %v1250 = vrcp.pop %v1196
        %v1251 = vrcp.pop %v1199
        %v1252 = vrcp.pop %v1202
        %v1253 = vrcp.pop %v1205
        %v1254 = vrcp.pop %v1208
        %v1255 = vrcp.pop %v1211
        %v1256 = vrcp.pop %v1214
        %v1257 = vrcp.pop %v1217
        %v1258 = vrcp.pop %v1220
        %v1259 = vrcp.pop %v1223
        %v1260 = vrcp.pop %v1226
        %v1261 = vrcp.pop %v1229
        %v1262 = vmul.f32 %v1007, %v1230
        %v1263 = vmul.f32 %v1009, %v1230
        %v1264 = vmul.f32 %v1011, %v1231
        %v1265 = vmul.f32 %v1013, %v1231
        %v1266 = vmul.f32 %v1015, %v1232
        %v1267 = vmul.f32 %v1017, %v1232
        %v1268 = vmul.f32 %v1019, %v1233
        %v1269 = vmul.f32 %v1021, %v1233
        %v1270 = vmul.f32 %v1023, %v1234
        %v1271 = vmul.f32 %v1025, %v1234
        %v1272 = vmul.f32 %v1027, %v1235
        %v1273 = vmul.f32 %v1029, %v1235
        %v1274 = vmul.f32 %v1031, %v1236
        %v1275 = vmul.f32 %v1033, %v1236
        %v1276 = vmul.f32 %v1035, %v1237
        %v1277 = vmul.f32 %v1037, %v1237
        %v1278 = vmul.f32 %v1039, %v1238
        %v1279 = vmul.f32 %v1041, %v1238
        %v1280 = vmul.f32 %v1043, %v1239
        %v1281 = vmul.f32 %v1045, %v1239
        %v1282 = vmul.f32 %v1047, %v1240
        %v1283 = vmul.f32 %v1049, %v1240
        %v1284 = vmul.f32 %v1051, %v1241
        %v1285 = vmul.f32 %v1053, %v1241
        %v1286 = vmul.f32 %v1055, %v1242
        %v1287 = vmul.f32 %v1057, %v1242
        %v1288 = vmul.f32 %v1059, %v1243
        %v1289 = vmul.f32 %v1061, %v1243
        %v1290 = vmul.f32 %v1063, %v1244
        %v1291 = vmul.f32 %v1065, %v1244
        %v1292 = vmul.f32 %v1067, %v1245
        %v1293 = vmul.f32 %v1069, %v1245
        %v1294 = vmul.f32 %v1071, %v1246
        %v1295 = vmul.f32 %v1073, %v1246
        %v1296 = vmul.f32 %v1075, %v1247
        %v1297 = vmul.f32 %v1077, %v1247
        %v1298 = vmul.f32 %v1079, %v1248
        %v1299 = vmul.f32 %v1081, %v1248
        %v1300 = vmul.f32 %v1083, %v1249
        %v1301 = vmul.f32 %v1085, %v1249
        %v1302 = vmul.f32 %v1087, %v1250
        %v1303 = vmul.f32 %v1089, %v1250
        %v1304 = vmul.f32 %v1091, %v1251
        %v1305 = vmul.f32 %v1093, %v1251
        %v1306 = vmul.f32 %v1095, %v1252
        %v1307 = vmul.f32 %v1097, %v1252
        %v1308 = vmul.f32 %v1099, %v1253
        %v1309 = vmul.f32 %v1101, %v1253
        %v1310 = vmul.f32 %v1103, %v1254
        %v1311 = vmul.f32 %v1105, %v1254
        %v1312 = vmul.f32 %v1107, %v1255
        %v1313 = vmul.f32 %v1109, %v1255
        %v1314 = vmul.f32 %v1111, %v1256
        %v1315 = vmul.f32 %v1113, %v1256
        %v1316 = vmul.f32 %v1115, %v1257
        %v1317 = vmul.f32 %v1117, %v1257
        %v1318 = vmul.f32 %v1119, %v1258
        %v1319 = vmul.f32 %v1121, %v1258
        %v1320 = vmul.f32 %v1123, %v1259
        %v1321 = vmul.f32 %v1125, %v1259
        %v1322 = vmul.f32 %v1127, %v1260
        %v1323 = vmul.f32 %v1129, %v1260
        %v1324 = vmul.f32 %v1131, %v1261
        %v1325 = vmul.f32 %v1133, %v1261
        %v1326 = vpack.c.bf16 %v1264, %v1262
        %v1327 = vpack.c.bf16 %v1265, %v1263
        %v1328 = vpack.c.bf16 %v1268, %v1266
        %v1329 = vpack.c.bf16 %v1269, %v1267
        %v1330 = vpack.c.bf16 %v1272, %v1270
        %v1331 = vpack.c.bf16 %v1273, %v1271
        %v1332 = vpack.c.bf16 %v1276, %v1274
        %v1333 = vpack.c.bf16 %v1277, %v1275
        %v1334 = vpack.c.bf16 %v1280, %v1278
        %v1335 = vpack.c.bf16 %v1281, %v1279
        %v1336 = vpack.c.bf16 %v1284, %v1282
        %v1337 = vpack.c.bf16 %v1285, %v1283
        %v1338 = vpack.c.bf16 %v1288, %v1286
        %v1339 = vpack.c.bf16 %v1289, %v1287
        %v1340 = vpack.c.bf16 %v1292, %v1290
        %v1341 = vpack.c.bf16 %v1293, %v1291
        %v1342 = vpack.c.bf16 %v1296, %v1294
        %v1343 = vpack.c.bf16 %v1297, %v1295
        %v1344 = vpack.c.bf16 %v1300, %v1298
        %v1345 = vpack.c.bf16 %v1301, %v1299
        %v1346 = vpack.c.bf16 %v1304, %v1302
        %v1347 = vpack.c.bf16 %v1305, %v1303
        %v1348 = vpack.c.bf16 %v1308, %v1306
        %v1349 = vpack.c.bf16 %v1309, %v1307
        %v1350 = vpack.c.bf16 %v1312, %v1310
        %v1351 = vpack.c.bf16 %v1313, %v1311
        %v1352 = vpack.c.bf16 %v1316, %v1314
        %v1353 = vpack.c.bf16 %v1317, %v1315
        %v1354 = vpack.c.bf16 %v1320, %v1318
        %v1355 = vpack.c.bf16 %v1321, %v1319
        %v1356 = vpack.c.bf16 %v1324, %v1322
        %v1357 = vpack.c.bf16 %v1325, %v1323
        %v1360 = vrot.slane %v564, 2
        %v1361 = vrot.slane %v565, 2
        %1364 = vmatprep.subr.bf16.mxu0 %v1341
        %1365 = vmatpush1.bf16.xpose.msra.mxu0 %v1340
        %1366 = vmatprep.subr.bf16.mxu0 %v1339
        %1367 = vmatpush1.bf16.xpose.msra.mxu0 %v1338
        %1368 = vmatprep.subr.bf16.mxu0 %v1337
        %1369 = vmatpush1.bf16.xpose.msra.mxu0 %v1336
        %1370 = vmatprep.subr.bf16.mxu0 %v1335
        %1371 = vmatpush1.bf16.xpose.msra.mxu0 %v1334
        %1372 = vmatprep.subr.bf16.mxu0 %v1333
        %1373 = vmatpush1.bf16.xpose.msra.mxu0 %v1332
        %1374 = vmatprep.subr.bf16.mxu0 %v1331
        %1375 = vmatpush1.bf16.xpose.msra.mxu0 %v1330
        %1376 = vmatprep.subr.bf16.mxu0 %v1329
        %1377 = vmatpush1.bf16.xpose.msra.mxu0 %v1328
        %1378 = vmatprep.subr.bf16.mxu0 %v1327
        %1379 = vmatpush1.bf16.xpose.msra.mxu0 %v1326
        %1380 = vmatprep.subr.bf16.mxu0 %v1357
        %1381 = vmatpush2.bf16.xpose.msra.mxu0 %v1356
        %1382 = vmatprep.subr.bf16.mxu0 %v1355
        %1383 = vmatpush2.bf16.xpose.msra.mxu0 %v1354
        %1384 = vmatprep.subr.bf16.mxu0 %v1353
        %1385 = vmatpush2.bf16.xpose.msra.mxu0 %v1352
        %1386 = vmatprep.subr.bf16.mxu0 %v1351
        %1387 = vmatpush2.bf16.xpose.msra.mxu0 %v1350
        %1388 = vmatprep.subr.bf16.mxu0 %v1349
        %1389 = vmatpush2.bf16.xpose.msra.mxu0 %v1348
        %1390 = vmatprep.subr.bf16.mxu0 %v1347
        %1391 = vmatpush2.bf16.xpose.msra.mxu0 %v1346
        %1392 = vmatprep.subr.bf16.mxu0 %v1345
        %1393 = vmatpush2.bf16.xpose.msra.mxu0 %v1344
        %1394 = vmatprep.subr.bf16.mxu0 %v1343
        %1395 = vmatpush2.bf16.xpose.msra.mxu0 %v1342
        %1396 = vmatprep.mubr.bf16.mxu0 %v1361
        %1397 = vmatmul.mubr.bf16.gmra.mxu0 %v1360
        %v1398 = vpop.f32.mrf.mxu0
        %v1399 = vadd.f32 0.0, %v1398
        %v1400 = vpop.f32.mrf.mxu0
        %v1401 = vadd.f32 0.0, %v1400
        %v1402 = vpop.f32.mrf.mxu0
        %v1403 = vpop.f32.mrf.mxu0
        %1404 = vdwg.mxu0
        %s1405 = sld [smem:[#allocation2]]
        %v1406 = vstv %s1405
        %v1407 = vmul.f32 %v1406, %v1399
        %v1408 = vmul.f32 %v1406, %v1401
        %v1410 = vadd.f32 %v1407, %v384
        %v1411 = vadd.f32 %v1408, %v394
        %v1412 = vld [vmem:[%s6] sm:$0xff]
        %v1413 = vld [vmem:[%s7] sm:$0xff]
        %1415 = vset.pattern.permute.xlu0 0
        %1416 = vperm.xlu0 %1415, %v1413
        %v1417 = vpop.permute.xlu0 %1416
        %v1420 = vsel %vm395, %v1412, 0
        %v1423 = vsel %vm399, %v1410, 0
        %v1426 = vsel %vm399, %v1411, 0
        %1428 = vmatprep.subr.mxu0 0.0
        %1429 = vmatpush1.msra.mxu0 0.0
        %1430 = vmatprep.subr.mxu0 0.0
        %1431 = vmatpush1.msra.mxu0 0.0
        %1432 = vmatprep.subr.mxu0 0.0
        %1433 = vmatpush1.msra.mxu0 0.0
        %1434 = vmatprep.subr.mxu0 0.0
        %1435 = vmatpush1.msra.mxu0 0.0
        %1436 = vmatprep.subr.mxu0 0.0
        %1437 = vmatpush1.msra.mxu0 0.0
        %1438 = vmatprep.subr.mxu0 0.0
        %1439 = vmatpush1.msra.mxu0 0.0
        %1440 = vmatprep.subr.mxu0 0.0
        %1441 = vmatpush1.msra.mxu0 0.0
        %1442 = vmatprep.subr.mxu0 0.0
        %1443 = vmatpush1.msra.mxu0 0.0
        %1444 = vmatprep.subr.mxu0 0.0
        %1445 = vmatpush1.msra.mxu0 0.0
        %1446 = vmatprep.subr.mxu0 0.0
        %1447 = vmatpush1.msra.mxu0 0.0
        %1448 = vmatprep.subr.mxu0 0.0
        %1449 = vmatpush1.msra.mxu0 0.0
        %1450 = vmatprep.subr.mxu0 0.0
        %1451 = vmatpush1.msra.mxu0 0.0
        %1452 = vmatprep.subr.mxu0 0.0
        %1453 = vmatpush1.msra.mxu0 0.0
        %1454 = vmatprep.subr.mxu0 0.0
        %1455 = vmatpush1.msra.mxu0 0.0
        %1456 = vmatprep.subr.mxu0 0.0
        %1457 = vmatpush1.msra.mxu0 0.0
        %1458 = vmatprep.subr.mxu0 %v1426
        %1459 = vmatpush1.msra.mxu0 %v1423
        %1460 = vmatprep.subr.mxu0 0.0
        %1461 = vmatpush2.msra.mxu0 0.0
        %1462 = vmatprep.subr.mxu0 0.0
        %1463 = vmatpush2.msra.mxu0 0.0
        %1464 = vmatprep.subr.mxu0 0.0
        %1465 = vmatpush2.msra.mxu0 0.0
        %1466 = vmatprep.subr.mxu0 0.0
        %1467 = vmatpush2.msra.mxu0 0.0
        %1468 = vmatprep.subr.mxu0 0.0
        %1469 = vmatpush2.msra.mxu0 0.0
        %1470 = vmatprep.subr.mxu0 0.0
        %1471 = vmatpush2.msra.mxu0 0.0
        %1472 = vmatprep.subr.mxu0 0.0
        %1473 = vmatpush2.msra.mxu0 0.0
        %1474 = vmatprep.subr.mxu0 0.0
        %1475 = vmatpush2.msra.mxu0 0.0
        %1476 = vmatprep.subr.mxu0 0.0
        %1477 = vmatpush2.msra.mxu0 0.0
        %1478 = vmatprep.subr.mxu0 0.0
        %1479 = vmatpush2.msra.mxu0 0.0
        %1480 = vmatprep.subr.mxu0 0.0
        %1481 = vmatpush2.msra.mxu0 0.0
        %1482 = vmatprep.subr.mxu0 0.0
        %1483 = vmatpush2.msra.mxu0 0.0
        %1484 = vmatprep.subr.mxu0 0.0
        %1485 = vmatpush2.msra.mxu0 0.0
        %1486 = vmatprep.subr.mxu0 0.0
        %1487 = vmatpush2.msra.mxu0 0.0
        %1488 = vmatprep.subr.mxu0 0.0
        %1489 = vmatpush2.msra.mxu0 0.0
        %1490 = vmatprep.subr.mxu0 0.0
        %1491 = vmatpush2.msra.mxu0 0.0
        %1492 = vmatprep.mubr.f32.mxu0 0.0
        %1493 = vmatmul.mubr.f32.gmra.mxu0 %v1420
        %v1494 = vpop.f32.mrf.mxu0
        %v1495 = vadd.f32 %v1417, %v1494
        %v1496 = vpop.f32.mrf.mxu0
        %v1497 = vadd.f32 %v1417, %v1496
        %1498 = vdwg.mxu0
        %1499 = vst [vmem:[%s366] sm:$0xff] %v1495
        %1500 = vst [vmem:[%s366 + $0x8] sm:$0xff] %v1497
        %s1501 = sand.u32 %s247, 1
        %s1502 = scalar_lea.sflag [#allocation4], %s1501
        %s1503 = sand.u32 %s247, 1
        %s1504 = smul.addr %s1503, 16
        %s1505 = scalar_lea.vmem [#allocation3], %s1504
        // Predicated region
        $region57: #{tpu_custom_call.1} parent=55 // pred_check
          %p1506 = pneg %p257
        $region58: #{tpu_custom_call.1} parent=55 // pred_check_branch
          %1508 = sbr.rel (%p1506) target = $region60
        $region59: #{tpu_custom_call.1} parent=55 // pred_region
          %s1509 = smul.u32 2, %s29
          %s1511 = ssub.s32 256, 256
          %1512 = vsyncadd %s1502, %s1511
          %s1513 = smul.addr %s28, 2
          %s1514 = sadd.s32 %s1509, %s1513
          %s1515 = smul.addr %s1514, 128
          %s1516 = scalar_lea.hbm %s9, %s1515
          %s1518 = sshll.u32 %s1505, 4
          %s1519 = int_to_ptr.vmem [resolvable:$true] %s1518
          %1521 = dma.vmem_to_hbm [thread:$0]  %s1519, 256, %s1516, %s1502
        $region60: #{tpu_custom_call.1} parent=55 // pred_fallthru
          _
      $region56: #{tpu_custom_call.1} parent=5 // pred_fallthru
        _
      %p1522 = scmp.le.s32.totalorder 2, %s19
      // Predicated region
      $region61: #{tpu_custom_call.1} parent=5 // pred_check
        %p1523 = pneg %p1522
      $region62: #{tpu_custom_call.1} parent=5 // pred_check_branch
        %1525 = sbr.rel (%p1523) target = $region64
      $region63: #{tpu_custom_call.1} parent=5 // pred_region
        %s1526 = ssub.s32 %s19, 2
        // Predicated region
        $region65: #{tpu_custom_call.1} parent=63 // pred_check
          %p1527 = pneg %p263
        $region66: #{tpu_custom_call.1} parent=63 // pred_check_branch
          %1529 = sbr.rel (%p1527) target = $region68
        $region67: #{tpu_custom_call.1} parent=63 // pred_region
          %s1530 = sand.u32 %s248, 1
          %s1531 = scalar_lea.sflag [#allocation4], %s1530
          %s1532 = sand.u32 %s248, 1
          %s1533 = smul.addr %s1532, 16
          %s1534 = scalar_lea.vmem [#allocation3], %s1533
          %1535 = dma.done %s1531, 256
        $region68: #{tpu_custom_call.1} parent=63 // pred_fallthru
          _
      $region64: #{tpu_custom_call.1} parent=5 // pred_fallthru
        _
    $region6: #{tpu_custom_call.1} parent=1 // loop_footer
      %s23 = sadd.s32 1, %s19
    $region7: #{tpu_custom_call.1} parent=1 // loop_footer_branch
      %18 = sbr.rel target = $region3
    $region8: #{tpu_custom_call.1} parent=1 // loop_exit
      _
    %1536 = vsyncpa [#allocation4], 1
    %s1537 = scalar_lea.sflag [#allocation4], 1
    %1538 = vsyncpa %s1537, 1

</llo_original>
